<compile_context>
chip_gen: v5e
topology: v5e:2x2
jax: 0.10.0
libtpu: 0.0.40
codegen_flags: <defaults>
</compile_context>

<pallas_src>
import math
import functools

import jax
import jax.numpy as jnp
from jax.experimental import pallas as pl
from jax.experimental.pallas import tpu as pltpu


def _layernorm(v, g, b, eps=1e-5):
    mu = jnp.mean(v, axis=-1, keepdims=True)
    var = jnp.mean((v - mu) ** 2, axis=-1, keepdims=True)
    return (v - mu) * jax.lax.rsqrt(var + eps) * g + b


def _transformer_block_kernel(
    x_ref,                      # (bb*T, C) f32 activation rows for this batch tile
    wqkv_ref,                   # (C, 3C) bf16  [Wq/sqrt(C) | Wk | Wv]
    wp_ref, bp_ref,             # (C, C) bf16, (1, C) f32
    g1_ref, be1_ref,            # (1, C) f32  ln1 gamma / beta
    g2_ref, be2_ref,            # (1, C) f32  ln2 gamma / beta
    w1_ref, b1_ref,             # (C, 4C) bf16, (1, 4C) f32
    w2_ref, b2_ref,             # (4C, C) bf16, (1, C) f32
    o_ref,                      # (bb*T, C)
    q_scr, k_scr, v_scr,        # (bb*n_head, T, hs) bf16 scratch
    y_scr,                      # (bb*T, C) bf16 scratch
    *, n_head, bb, seq_len, hidden_tile,
):
    f32, bf16 = jnp.float32, jnp.bfloat16
    x = x_ref[...].astype(f32)
    N, C = x.shape
    T = seq_len
    hs = C // n_head

    # ---- ln1 (f32 VPU) + fused QKV projection (bf16 MXU, f32 accumulate) ----
    # NB: the PyTorch Head divides by sqrt(X.shape[-1]) == sqrt(n_embd); that scale is
    # pre-folded into the Wq columns in the wrapper, so nothing to do here.
    xn = _layernorm(x, g1_ref[...], be1_ref[...])
    qkv = jnp.dot(xn.astype(bf16), wqkv_ref[...], preferred_element_type=f32)   # (N, 3C)
    q = qkv[:, :C]
    k = qkv[:, C:2 * C]
    v = qkv[:, 2 * C:]

    # ---- regroup to (bb*n_head, T, hs) head-major bf16 scratch (cast at store time) ----
    # TODO(synk): use lax.fori_loop over b (pl.ds rows) when bb*n_head gets large.
    for b in range(bb):
        rows = slice(b * T, (b + 1) * T)
        for h in range(n_head):
            lanes = slice(h * hs, (h + 1) * hs)
            idx = b * n_head + h
            q_scr[idx] = q[rows, lanes].astype(bf16)
            k_scr[idx] = k[rows, lanes].astype(bf16)
            v_scr[idx] = v[rows, lanes].astype(bf16)

    qh = q_scr[...]
    kh = k_scr[...]
    vh = v_scr[...]

    # ---- single batched causal attention over the fused (batch, head) axis ----
    # TODO(synk): flash/causal-tile the kv axis (online softmax) at production T so the
    #             (bb*H, T, T) score tensor never materializes (v7x 64 MiB VMEM).
    s = jnp.einsum('bqd,bkd->bqk', qh, kh, preferred_element_type=f32)   # (bb*H, T, T) f32
    rr = jax.lax.broadcasted_iota(jnp.int32, (T, T), 0)
    cc = jax.lax.broadcasted_iota(jnp.int32, (T, T), 1)
    causal = (rr >= cc)[None, :, :]
    s = jnp.where(causal, s, -jnp.inf)       # diagonal always unmasked -> no all -inf rows
    s = s - jnp.max(s, axis=-1, keepdims=True)
    p = jnp.exp(s)                           # unnormalized, values in (0, 1]
    denom = jnp.sum(p, axis=-1, keepdims=True)
    # Normalize AFTER the PV matmul: (bb*H, T, hs) multiply instead of (bb*H, T, T).
    o_h = jnp.einsum('bqk,bkd->bqd', p.astype(bf16), vh, preferred_element_type=f32)
    o_h = o_h * pl.reciprocal(denom, approx=True)        # EUP slot, frees VALU

    # ---- scatter head outputs straight into a (N, C) bf16 slab (no concat relayout) ----
    for b in range(bb):
        rows = slice(b * T, (b + 1) * T)
        for h in range(n_head):
            y_scr[rows, h * hs:(h + 1) * hs] = o_h[b * n_head + h].astype(bf16)

    attn = jnp.dot(y_scr[...], wp_ref[...], preferred_element_type=f32) + bp_ref[...]
    x1 = x + attn

    # ---- ln2 + feed-forward; hidden dim (4C) tiled so (N, 4C) never materializes ----
    xn2 = _layernorm(x1, g2_ref[...], be2_ref[...])
    xn2b = xn2.astype(bf16)
    ffn = jnp.zeros((N, C), f32)
    for t in range(4 * C // hidden_tile):
        sl = slice(t * hidden_tile, (t + 1) * hidden_tile)
        h1 = jnp.maximum(
            jnp.dot(xn2b, w1_ref[:, sl], preferred_element_type=f32) + b1_ref[:, sl], 0.0)
        ffn = ffn + jnp.dot(h1.astype(bf16), w2_ref[sl, :], preferred_element_type=f32)
    ffn = ffn + b2_ref[...]

    o_ref[...] = (x1 + ffn).astype(o_ref.dtype)


def _default_batch_block(B, T):
    # Prefer >=2 grid steps (megacore on v7x + cross-step DMA/compute overlap everywhere),
    # while keeping each slab a decent number of rows (>=512 when possible).
    if B == 1:
        return 1
    divisors = [d for d in range(1, B // 2 + 1) if B % d == 0]
    big = [d for d in divisors if d * T >= 512]
    return max(big) if big else max(divisors)


def _vmem_limit_bytes(bb, T, C, n_head, hidden_tile):
    N = bb * T
    BH = bb * n_head
    hs = C // n_head
    # bf16 matmul weights (single-buffered) + f32 biases/LN params.
    wgts = 12 * C * C * 2 + (2 * C + 4 * C + 6 * C) * 4
    # double-buffered f32 input/output activation slabs
    io = 2 * 2 * N * C * 4
    # bf16 scratch: head-major Q/K/V + concat-of-heads slab
    scr = (3 * BH * T * hs + N * C) * 2
    # in-kernel f32 temporaries: qkv, a few N*C slabs, scores+probs, head out, one hidden tile
    tmp = (N * 3 * C + 8 * N * C + 2 * BH * T * T + 2 * BH * T * hs + 3 * N * hidden_tile) * 4
    est = int(1.5 * (wgts + io + scr + tmp))
    try:
        cap = int(pltpu.get_tpu_info().vmem_capacity_bytes)
    except Exception:
        cap = 128 * 1024 * 1024
    ceiling = (cap * 7) // 8          # ~56 MiB on v7x (64 MiB/TC), ~112 MiB on v5e/v6e
    return int(min(max(est, 32 * 1024 * 1024), ceiling))


def transformer_block(x, params, n_head, *, batch_block=None):
    """x: (B, T, C) float32. params: dict of pre-transposed f32 weights (y = x @ W + b)."""
    B, T, C = x.shape
    assert C % n_head == 0, "n_embd must be divisible by n_head"
    bb = _default_batch_block(B, T) if batch_block is None else batch_block
    assert B % bb == 0, "batch must be divisible by batch_block"
    n_rows = bb * T
    hidden_tile = 512 if (4 * C) % 512 == 0 else 4 * C

    f32, bf16 = jnp.float32, jnp.bfloat16
    # Fused QKV weight with 1/sqrt(C) folded into the Wq columns; all matmul weights bf16.
    scale = 1.0 / math.sqrt(C)
    wqkv = jnp.concatenate(
        [params["wq"] * scale, params["wk"], params["wv"]], axis=1).astype(bf16)
    wproj = params["wproj"].astype(bf16)
    w1 = params["w1"].astype(bf16)
    w2 = params["w2"].astype(bf16)
    bproj = params["bproj"].astype(f32)
    b1 = params["b1"].astype(f32)
    b2 = params["b2"].astype(f32)
    g1 = params["ln1_g"].astype(f32); be1 = params["ln1_b"].astype(f32)
    g2 = params["ln2_g"].astype(f32); be2 = params["ln2_b"].astype(f32)

    # Collapse (B, T) into rows so each grid step processes a lane-dense (bb*T, C) slab.
    x2d = x.reshape(B * T, C)

    # Constant-index weight/bias blocks: fetched once, single-buffered (halves weight VMEM).
    const = lambda r, c: pl.BlockSpec((r, c), lambda i: (0, 0), pipeline_mode=pl.Buffered(1))
    kernel = functools.partial(
        _transformer_block_kernel, n_head=n_head, bb=bb, seq_len=T, hidden_tile=hidden_tile)

    flops = int(24 * B * T * C * C + 4 * B * T * T * C)
    transcendentals = int(B * n_head * T * T + B * n_head * T + 2 * B * T)
    bytes_accessed = int(2 * B * T * C * 4 + 12 * C * C * 2 + 10 * C * 4)

    out2d = pl.pallas_call(
        kernel,
        out_shape=jax.ShapeDtypeStruct((B * T, C), x.dtype),
        grid_spec=pltpu.PrefetchScalarGridSpec(
            num_scalar_prefetch=0,
            grid=(B // bb,),
            in_specs=[
                pl.BlockSpec((n_rows, C), lambda i: (i, 0)),   # activations: double-buffered
                const(C, 3 * C),                   # Wqkv
                const(C, C), const(1, C),          # Wproj, bproj
                const(1, C), const(1, C),          # ln1 gamma, beta
                const(1, C), const(1, C),          # ln2 gamma, beta
                const(C, 4 * C), const(1, 4 * C),  # W1, b1
                const(4 * C, C), const(1, C),      # W2, b2
            ],
            out_specs=pl.BlockSpec((n_rows, C), lambda i: (i, 0)),
            scratch_shapes=[
                pltpu.VMEM((bb * n_head, T, C // n_head), bf16),   # Q head-major
                pltpu.VMEM((bb * n_head, T, C // n_head), bf16),   # K head-major
                pltpu.VMEM((bb * n_head, T, C // n_head), bf16),   # V head-major
                pltpu.VMEM((n_rows, C), bf16),                     # concat-of-heads
            ],
        ),
        compiler_params=pltpu.CompilerParams(
            dimension_semantics=("parallel",),
            vmem_limit_bytes=_vmem_limit_bytes(bb, T, C, n_head, hidden_tile),
        ),
        cost_estimate=pl.CostEstimate(
            flops=flops, transcendentals=transcendentals, bytes_accessed=bytes_accessed),
    )(
        x2d, wqkv, wproj, bproj, g1, be1, g2, be2, w1, b1, w2, b2,
    )
    return out2d.reshape(B, T, C)


def reference_block(x, p, n_head):
    """Pure-JAX f32 reference mirroring the PyTorch forward (eval-mode dropout)."""
    B, T, C = x.shape
    hs = C // n_head
    xn = _layernorm(x, p["ln1_g"], p["ln1_b"])
    Q = xn @ p["wq"]; K = xn @ p["wk"]; V = xn @ p["wv"]
    mask = jnp.tril(jnp.ones((T, T), bool))
    outs = []
    for h in range(n_head):
        Qh = Q[..., h * hs:(h + 1) * hs]
        Kh = K[..., h * hs:(h + 1) * hs]
        Vh = V[..., h * hs:(h + 1) * hs]
        s = jnp.einsum("btd,bsd->bts", Qh, Kh)
        s = jnp.where(mask, s, -jnp.inf) / math.sqrt(C)
        a = jax.nn.softmax(s, axis=-1)
        outs.append(jnp.einsum("bts,bsd->btd", a, Vh))
    y = jnp.concatenate(outs, axis=-1)
    x1 = x + (y @ p["wproj"] + p["bproj"])
    xn2 = _layernorm(x1, p["ln2_g"], p["ln2_b"])
    ffn = jnp.maximum(xn2 @ p["w1"] + p["b1"], 0.0) @ p["w2"] + p["b2"]
    return x1 + ffn


if __name__ == "__main__":
    B, T, C = 2, 8, 32          # batch, block_size (seq), n_embd
    n_head = 4

    key = jax.random.PRNGKey(0)
    ks = jax.random.split(key, 12)
    scale = 0.05
    params = {
        "wq": scale * jax.random.normal(ks[0], (C, C), jnp.float32),
        "wk": scale * jax.random.normal(ks[1], (C, C), jnp.float32),
        "wv": scale * jax.random.normal(ks[2], (C, C), jnp.float32),
        "wproj": scale * jax.random.normal(ks[3], (C, C), jnp.float32),
        "bproj": scale * jax.random.normal(ks[4], (1, C), jnp.float32),
        "ln1_g": jnp.ones((1, C), jnp.float32),
        "ln1_b": jnp.zeros((1, C), jnp.float32),
        "ln2_g": jnp.ones((1, C), jnp.float32),
        "ln2_b": jnp.zeros((1, C), jnp.float32),
        "w1": scale * jax.random.normal(ks[5], (C, 4 * C), jnp.float32),
        "b1": scale * jax.random.normal(ks[6], (1, 4 * C), jnp.float32),
        "w2": scale * jax.random.normal(ks[7], (4 * C, C), jnp.float32),
        "b2": scale * jax.random.normal(ks[8], (1, C), jnp.float32),
    }

    x = jax.random.normal(ks[9], (B, T, C), jnp.float32)

    out = jax.block_until_ready(transformer_block(x, params, n_head))
    ref = reference_block(x, params, n_head)

    assert out.shape == (B, T, C)
    err = float(jnp.max(jnp.abs(out - ref)))
    # Tolerance accounts for deliberate bf16 MXU streaming + approx reciprocal vs f32 reference.
    assert err < 2e-2, f"mismatch vs reference: max abs err {err}"

    print("KERNEL_OK")
</pallas_src>

<mosaic_0001>
module attributes {stable_mosaic.version = 11 : i64} {
  func.func @_transformer_block_kernel(%arg0: i32, %arg1: memref<8x32xf32, #tpu.memory_space<vmem>>, %arg2: memref<32x96xbf16, #tpu.memory_space<vmem>>, %arg3: memref<32x32xbf16, #tpu.memory_space<vmem>>, %arg4: memref<1x32xf32, #tpu.memory_space<vmem>>, %arg5: memref<1x32xf32, #tpu.memory_space<vmem>>, %arg6: memref<1x32xf32, #tpu.memory_space<vmem>>, %arg7: memref<1x32xf32, #tpu.memory_space<vmem>>, %arg8: memref<1x32xf32, #tpu.memory_space<vmem>>, %arg9: memref<32x128xbf16, #tpu.memory_space<vmem>>, %arg10: memref<1x128xf32, #tpu.memory_space<vmem>>, %arg11: memref<128x32xbf16, #tpu.memory_space<vmem>>, %arg12: memref<1x32xf32, #tpu.memory_space<vmem>>, %arg13: memref<8x32xf32, #tpu.memory_space<vmem>>, %arg14: memref<4x8x8xbf16, #tpu.memory_space<vmem>>, %arg15: memref<4x8x8xbf16, #tpu.memory_space<vmem>>, %arg16: memref<4x8x8xbf16, #tpu.memory_space<vmem>>, %arg17: memref<8x32xbf16, #tpu.memory_space<vmem>>) attributes {dimension_semantics = [#tpu.dimension_semantics<parallel>], iteration_bounds = array<i64: 2>, scalar_prefetch = 0 : i64, scratch_operands = 4 : i64, tpu.core_type = #tpu.core_type<tc>, window_params = [{transform_indices = @transform_0, window_bounds = array<i64: 8, 32>}, {pipeline_mode = #tpu.pipeline_mode<synchronous>, transform_indices = @transform_1, window_bounds = array<i64: 32, 96>}, {pipeline_mode = #tpu.pipeline_mode<synchronous>, transform_indices = @transform_2, window_bounds = array<i64: 32, 32>}, {pipeline_mode = #tpu.pipeline_mode<synchronous>, transform_indices = @transform_3, window_bounds = array<i64: 1, 32>}, {pipeline_mode = #tpu.pipeline_mode<synchronous>, transform_indices = @transform_4, window_bounds = array<i64: 1, 32>}, {pipeline_mode = #tpu.pipeline_mode<synchronous>, transform_indices = @transform_5, window_bounds = array<i64: 1, 32>}, {pipeline_mode = #tpu.pipeline_mode<synchronous>, transform_indices = @transform_6, window_bounds = array<i64: 1, 32>}, {pipeline_mode = #tpu.pipeline_mode<synchronous>, transform_indices = @transform_7, window_bounds = array<i64: 1, 32>}, {pipeline_mode = #tpu.pipeline_mode<synchronous>, transform_indices = @transform_8, window_bounds = array<i64: 32, 128>}, {pipeline_mode = #tpu.pipeline_mode<synchronous>, transform_indices = @transform_9, window_bounds = array<i64: 1, 128>}, {pipeline_mode = #tpu.pipeline_mode<synchronous>, transform_indices = @transform_10, window_bounds = array<i64: 128, 32>}, {pipeline_mode = #tpu.pipeline_mode<synchronous>, transform_indices = @transform_11, window_bounds = array<i64: 1, 32>}, {transform_indices = @transform_12, window_bounds = array<i64: 8, 32>}]} {
    %c0 = arith.constant 0 : index
    %c0_0 = arith.constant 0 : index
    %0 = vector.load %arg1[%c0, %c0_0] : memref<8x32xf32, #tpu.memory_space<vmem>>, vector<8x32xf32>
    %c0_1 = arith.constant 0 : index
    %c0_2 = arith.constant 0 : index
    %1 = vector.load %arg5[%c0_1, %c0_2] : memref<1x32xf32, #tpu.memory_space<vmem>>, vector<1x32xf32>
    %c0_3 = arith.constant 0 : index
    %c0_4 = arith.constant 0 : index
    %2 = vector.load %arg6[%c0_3, %c0_4] : memref<1x32xf32, #tpu.memory_space<vmem>>, vector<1x32xf32>
    %cst = arith.constant dense<0.000000e+00> : vector<8xf32>
    %3 = vector.multi_reduction <add>, %0, %cst [1] : vector<8x32xf32> to vector<8xf32>
    %4 = vector.shape_cast %3 : vector<8xf32> to vector<8x1xf32>
    %cst_5 = arith.constant 3.200000e+01 : f32
    %5 = vector.broadcast %cst_5 : f32 to vector<8x1xf32>
    %6 = arith.divf %4, %5 : vector<8x1xf32>
    %7 = vector.broadcast %6 : vector<8x1xf32> to vector<8x32xf32>
    %8 = arith.subf %0, %7 : vector<8x32xf32>
    %9 = arith.mulf %8, %8 : vector<8x32xf32>
    %cst_6 = arith.constant dense<0.000000e+00> : vector<8xf32>
    %10 = vector.multi_reduction <add>, %9, %cst_6 [1] : vector<8x32xf32> to vector<8xf32>
    %11 = vector.shape_cast %10 : vector<8xf32> to vector<8x1xf32>
    %cst_7 = arith.constant 3.200000e+01 : f32
    %12 = vector.broadcast %cst_7 : f32 to vector<8x1xf32>
    %13 = arith.divf %11, %12 : vector<8x1xf32>
    %14 = vector.broadcast %6 : vector<8x1xf32> to vector<8x32xf32>
    %15 = arith.subf %0, %14 : vector<8x32xf32>
    %cst_8 = arith.constant 9.99999974E-6 : f32
    %16 = vector.broadcast %cst_8 : f32 to vector<8x1xf32>
    %17 = arith.addf %13, %16 : vector<8x1xf32>
    %18 = math.rsqrt %17 : vector<8x1xf32>
    %19 = vector.broadcast %18 : vector<8x1xf32> to vector<8x32xf32>
    %20 = arith.mulf %15, %19 : vector<8x32xf32>
    %21 = vector.broadcast %1 : vector<1x32xf32> to vector<8x32xf32>
    %22 = arith.mulf %20, %21 : vector<8x32xf32>
    %23 = vector.broadcast %2 : vector<1x32xf32> to vector<8x32xf32>
    %24 = arith.addf %22, %23 : vector<8x32xf32>
    %25 = arith.truncf %24 : vector<8x32xf32> to vector<8x32xbf16>
    %c0_9 = arith.constant 0 : index
    %c0_10 = arith.constant 0 : index
    %26 = vector.load %arg2[%c0_9, %c0_10] : memref<32x96xbf16, #tpu.memory_space<vmem>>, vector<32x96xbf16>
    %cst_11 = arith.constant dense<0.000000e+00> : vector<8x96xf32>
    %27 = tpu.matmul %25, %26, %cst_11 {dimension_numbers = #tpu.dot_dimension_numbers<[1], [0], [0], [1], [0, 0, 1, 1], [], []>} : vector<8x32xbf16>, vector<32x96xbf16>, vector<8x96xf32> -> vector<8x96xf32>
    %28 = vector.extract_strided_slice %27 {offsets = [0, 0], sizes = [8, 32], strides = [1, 1]} : vector<8x96xf32> to vector<8x32xf32>
    %29 = vector.extract_strided_slice %27 {offsets = [0, 32], sizes = [8, 32], strides = [1, 1]} : vector<8x96xf32> to vector<8x32xf32>
    %30 = vector.extract_strided_slice %27 {offsets = [0, 64], sizes = [8, 32], strides = [1, 1]} : vector<8x96xf32> to vector<8x32xf32>
    %31 = vector.extract_strided_slice %28 {offsets = [0, 0], sizes = [8, 8], strides = [1, 1]} : vector<8x32xf32> to vector<8x8xf32>
    %32 = arith.truncf %31 : vector<8x8xf32> to vector<8x8xbf16>
    %c0_12 = arith.constant 0 : index
    %c0_13 = arith.constant 0 : index
    %c0_14 = arith.constant 0 : index
    %33 = vector.load %arg14[%c0_12, %c0_13, %c0_14] : memref<4x8x8xbf16, #tpu.memory_space<vmem>>, vector<1x8x8xbf16>
    %34 = vector.shape_cast %33 : vector<1x8x8xbf16> to vector<8x8xbf16>
    %35 = vector.shape_cast %32 : vector<8x8xbf16> to vector<1x8x8xbf16>
    tpu.vector_store %arg14[%c0_12, %c0_13, %c0_14], %35 {strides = array<i32>} : memref<4x8x8xbf16, #tpu.memory_space<vmem>>, vector<1x8x8xbf16>,
    %36 = vector.extract_strided_slice %29 {offsets = [0, 0], sizes = [8, 8], strides = [1, 1]} : vector<8x32xf32> to vector<8x8xf32>
    %37 = arith.truncf %36 : vector<8x8xf32> to vector<8x8xbf16>
    %c0_15 = arith.constant 0 : index
    %c0_16 = arith.constant 0 : index
    %c0_17 = arith.constant 0 : index
    %38 = vector.load %arg15[%c0_15, %c0_16, %c0_17] : memref<4x8x8xbf16, #tpu.memory_space<vmem>>, vector<1x8x8xbf16>
    %39 = vector.shape_cast %38 : vector<1x8x8xbf16> to vector<8x8xbf16>
    %40 = vector.shape_cast %37 : vector<8x8xbf16> to vector<1x8x8xbf16>
    tpu.vector_store %arg15[%c0_15, %c0_16, %c0_17], %40 {strides = array<i32>} : memref<4x8x8xbf16, #tpu.memory_space<vmem>>, vector<1x8x8xbf16>,
    %41 = vector.extract_strided_slice %30 {offsets = [0, 0], sizes = [8, 8], strides = [1, 1]} : vector<8x32xf32> to vector<8x8xf32>
    %42 = arith.truncf %41 : vector<8x8xf32> to vector<8x8xbf16>
    %c0_18 = arith.constant 0 : index
    %c0_19 = arith.constant 0 : index
    %c0_20 = arith.constant 0 : index
    %43 = vector.load %arg16[%c0_18, %c0_19, %c0_20] : memref<4x8x8xbf16, #tpu.memory_space<vmem>>, vector<1x8x8xbf16>
    %44 = vector.shape_cast %43 : vector<1x8x8xbf16> to vector<8x8xbf16>
    %45 = vector.shape_cast %42 : vector<8x8xbf16> to vector<1x8x8xbf16>
    tpu.vector_store %arg16[%c0_18, %c0_19, %c0_20], %45 {strides = array<i32>} : memref<4x8x8xbf16, #tpu.memory_space<vmem>>, vector<1x8x8xbf16>,
    %46 = vector.extract_strided_slice %28 {offsets = [0, 8], sizes = [8, 8], strides = [1, 1]} : vector<8x32xf32> to vector<8x8xf32>
    %47 = arith.truncf %46 : vector<8x8xf32> to vector<8x8xbf16>
    %c1 = arith.constant 1 : index
    %c0_21 = arith.constant 0 : index
    %c0_22 = arith.constant 0 : index
    %48 = vector.load %arg14[%c1, %c0_21, %c0_22] : memref<4x8x8xbf16, #tpu.memory_space<vmem>>, vector<1x8x8xbf16>
    %49 = vector.shape_cast %48 : vector<1x8x8xbf16> to vector<8x8xbf16>
    %50 = vector.shape_cast %47 : vector<8x8xbf16> to vector<1x8x8xbf16>
    tpu.vector_store %arg14[%c1, %c0_21, %c0_22], %50 {strides = array<i32>} : memref<4x8x8xbf16, #tpu.memory_space<vmem>>, vector<1x8x8xbf16>,
    %51 = vector.extract_strided_slice %29 {offsets = [0, 8], sizes = [8, 8], strides = [1, 1]} : vector<8x32xf32> to vector<8x8xf32>
    %52 = arith.truncf %51 : vector<8x8xf32> to vector<8x8xbf16>
    %c1_23 = arith.constant 1 : index
    %c0_24 = arith.constant 0 : index
    %c0_25 = arith.constant 0 : index
    %53 = vector.load %arg15[%c1_23, %c0_24, %c0_25] : memref<4x8x8xbf16, #tpu.memory_space<vmem>>, vector<1x8x8xbf16>
    %54 = vector.shape_cast %53 : vector<1x8x8xbf16> to vector<8x8xbf16>
    %55 = vector.shape_cast %52 : vector<8x8xbf16> to vector<1x8x8xbf16>
    tpu.vector_store %arg15[%c1_23, %c0_24, %c0_25], %55 {strides = array<i32>} : memref<4x8x8xbf16, #tpu.memory_space<vmem>>, vector<1x8x8xbf16>,
    %56 = vector.extract_strided_slice %30 {offsets = [0, 8], sizes = [8, 8], strides = [1, 1]} : vector<8x32xf32> to vector<8x8xf32>
    %57 = arith.truncf %56 : vector<8x8xf32> to vector<8x8xbf16>
    %c1_26 = arith.constant 1 : index
    %c0_27 = arith.constant 0 : index
    %c0_28 = arith.constant 0 : index
    %58 = vector.load %arg16[%c1_26, %c0_27, %c0_28] : memref<4x8x8xbf16, #tpu.memory_space<vmem>>, vector<1x8x8xbf16>
    %59 = vector.shape_cast %58 : vector<1x8x8xbf16> to vector<8x8xbf16>
    %60 = vector.shape_cast %57 : vector<8x8xbf16> to vector<1x8x8xbf16>
    tpu.vector_store %arg16[%c1_26, %c0_27, %c0_28], %60 {strides = array<i32>} : memref<4x8x8xbf16, #tpu.memory_space<vmem>>, vector<1x8x8xbf16>,
    %61 = vector.extract_strided_slice %28 {offsets = [0, 16], sizes = [8, 8], strides = [1, 1]} : vector<8x32xf32> to vector<8x8xf32>
    %62 = arith.truncf %61 : vector<8x8xf32> to vector<8x8xbf16>
    %c2 = arith.constant 2 : index
    %c0_29 = arith.constant 0 : index
    %c0_30 = arith.constant 0 : index
    %63 = vector.load %arg14[%c2, %c0_29, %c0_30] : memref<4x8x8xbf16, #tpu.memory_space<vmem>>, vector<1x8x8xbf16>
    %64 = vector.shape_cast %63 : vector<1x8x8xbf16> to vector<8x8xbf16>
    %65 = vector.shape_cast %62 : vector<8x8xbf16> to vector<1x8x8xbf16>
    tpu.vector_store %arg14[%c2, %c0_29, %c0_30], %65 {strides = array<i32>} : memref<4x8x8xbf16, #tpu.memory_space<vmem>>, vector<1x8x8xbf16>,
    %66 = vector.extract_strided_slice %29 {offsets = [0, 16], sizes = [8, 8], strides = [1, 1]} : vector<8x32xf32> to vector<8x8xf32>
    %67 = arith.truncf %66 : vector<8x8xf32> to vector<8x8xbf16>
    %c2_31 = arith.constant 2 : index
    %c0_32 = arith.constant 0 : index
    %c0_33 = arith.constant 0 : index
    %68 = vector.load %arg15[%c2_31, %c0_32, %c0_33] : memref<4x8x8xbf16, #tpu.memory_space<vmem>>, vector<1x8x8xbf16>
    %69 = vector.shape_cast %68 : vector<1x8x8xbf16> to vector<8x8xbf16>
    %70 = vector.shape_cast %67 : vector<8x8xbf16> to vector<1x8x8xbf16>
    tpu.vector_store %arg15[%c2_31, %c0_32, %c0_33], %70 {strides = array<i32>} : memref<4x8x8xbf16, #tpu.memory_space<vmem>>, vector<1x8x8xbf16>,
    %71 = vector.extract_strided_slice %30 {offsets = [0, 16], sizes = [8, 8], strides = [1, 1]} : vector<8x32xf32> to vector<8x8xf32>
    %72 = arith.truncf %71 : vector<8x8xf32> to vector<8x8xbf16>
    %c2_34 = arith.constant 2 : index
    %c0_35 = arith.constant 0 : index
    %c0_36 = arith.constant 0 : index
    %73 = vector.load %arg16[%c2_34, %c0_35, %c0_36] : memref<4x8x8xbf16, #tpu.memory_space<vmem>>, vector<1x8x8xbf16>
    %74 = vector.shape_cast %73 : vector<1x8x8xbf16> to vector<8x8xbf16>
    %75 = vector.shape_cast %72 : vector<8x8xbf16> to vector<1x8x8xbf16>
    tpu.vector_store %arg16[%c2_34, %c0_35, %c0_36], %75 {strides = array<i32>} : memref<4x8x8xbf16, #tpu.memory_space<vmem>>, vector<1x8x8xbf16>,
    %76 = vector.extract_strided_slice %28 {offsets = [0, 24], sizes = [8, 8], strides = [1, 1]} : vector<8x32xf32> to vector<8x8xf32>
    %77 = arith.truncf %76 : vector<8x8xf32> to vector<8x8xbf16>
    %c3 = arith.constant 3 : index
    %c0_37 = arith.constant 0 : index
    %c0_38 = arith.constant 0 : index
    %78 = vector.load %arg14[%c3, %c0_37, %c0_38] : memref<4x8x8xbf16, #tpu.memory_space<vmem>>, vector<1x8x8xbf16>
    %79 = vector.shape_cast %78 : vector<1x8x8xbf16> to vector<8x8xbf16>
    %80 = vector.shape_cast %77 : vector<8x8xbf16> to vector<1x8x8xbf16>
    tpu.vector_store %arg14[%c3, %c0_37, %c0_38], %80 {strides = array<i32>} : memref<4x8x8xbf16, #tpu.memory_space<vmem>>, vector<1x8x8xbf16>,
    %81 = vector.extract_strided_slice %29 {offsets = [0, 24], sizes = [8, 8], strides = [1, 1]} : vector<8x32xf32> to vector<8x8xf32>
    %82 = arith.truncf %81 : vector<8x8xf32> to vector<8x8xbf16>
    %c3_39 = arith.constant 3 : index
    %c0_40 = arith.constant 0 : index
    %c0_41 = arith.constant 0 : index
    %83 = vector.load %arg15[%c3_39, %c0_40, %c0_41] : memref<4x8x8xbf16, #tpu.memory_space<vmem>>, vector<1x8x8xbf16>
    %84 = vector.shape_cast %83 : vector<1x8x8xbf16> to vector<8x8xbf16>
    %85 = vector.shape_cast %82 : vector<8x8xbf16> to vector<1x8x8xbf16>
    tpu.vector_store %arg15[%c3_39, %c0_40, %c0_41], %85 {strides = array<i32>} : memref<4x8x8xbf16, #tpu.memory_space<vmem>>, vector<1x8x8xbf16>,
    %86 = vector.extract_strided_slice %30 {offsets = [0, 24], sizes = [8, 8], strides = [1, 1]} : vector<8x32xf32> to vector<8x8xf32>
    %87 = arith.truncf %86 : vector<8x8xf32> to vector<8x8xbf16>
    %c3_42 = arith.constant 3 : index
    %c0_43 = arith.constant 0 : index
    %c0_44 = arith.constant 0 : index
    %88 = vector.load %arg16[%c3_42, %c0_43, %c0_44] : memref<4x8x8xbf16, #tpu.memory_space<vmem>>, vector<1x8x8xbf16>
    %89 = vector.shape_cast %88 : vector<1x8x8xbf16> to vector<8x8xbf16>
    %90 = vector.shape_cast %87 : vector<8x8xbf16> to vector<1x8x8xbf16>
    tpu.vector_store %arg16[%c3_42, %c0_43, %c0_44], %90 {strides = array<i32>} : memref<4x8x8xbf16, #tpu.memory_space<vmem>>, vector<1x8x8xbf16>,
    %c0_45 = arith.constant 0 : index
    %c0_46 = arith.constant 0 : index
    %c0_47 = arith.constant 0 : index
    %91 = vector.load %arg14[%c0_45, %c0_46, %c0_47] : memref<4x8x8xbf16, #tpu.memory_space<vmem>>, vector<4x8x8xbf16>
    %c0_48 = arith.constant 0 : index
    %c0_49 = arith.constant 0 : index
    %c0_50 = arith.constant 0 : index
    %92 = vector.load %arg15[%c0_48, %c0_49, %c0_50] : memref<4x8x8xbf16, #tpu.memory_space<vmem>>, vector<4x8x8xbf16>
    %c0_51 = arith.constant 0 : index
    %c0_52 = arith.constant 0 : index
    %c0_53 = arith.constant 0 : index
    %93 = vector.load %arg16[%c0_51, %c0_52, %c0_53] : memref<4x8x8xbf16, #tpu.memory_space<vmem>>, vector<4x8x8xbf16>
    "tpu.trace_start"() <{level = 10 : i32, message = "bqd,bkd->bqk"}> : () -> ()
    %cst_54 = arith.constant dense<0.000000e+00> : vector<4x8x8xf32>
    %94 = tpu.matmul %91, %92, %cst_54 {dimension_numbers = #tpu.dot_dimension_numbers<[2], [2], [1], [1], [0, 0, 0, 1, 1, 1], [0], [0]>} : vector<4x8x8xbf16>, vector<4x8x8xbf16>, vector<4x8x8xf32> -> vector<4x8x8xf32>
    "tpu.trace_stop"() : () -> ()
    %95 = tpu.iota {dimensions = array<i32: 0>} : vector<8x8xi32>
    %96 = tpu.iota {dimensions = array<i32: 1>} : vector<8x8xi32>
    %97 = arith.cmpi sge, %95, %96 : vector<8x8xi32>
    %98 = vector.shape_cast %97 : vector<8x8xi1> to vector<1x8x8xi1>
    %cst_55 = arith.constant 0xFF800000 : f32
    %99 = vector.shape_cast %98 : vector<1x8x8xi1> to vector<1x8x8xi1>
    %100 = vector.broadcast %99 : vector<1x8x8xi1> to vector<4x8x8xi1>
    %101 = vector.broadcast %cst_55 : f32 to vector<4x8x8xf32>
    %102 = arith.select %100, %94, %101 : vector<4x8x8xi1>, vector<4x8x8xf32>
    %cst_56 = arith.constant dense<0xFF800000> : vector<4x8xf32>
    %103 = vector.multi_reduction <maximumf>, %102, %cst_56 [2] : vector<4x8x8xf32> to vector<4x8xf32>
    %104 = vector.shape_cast %103 : vector<4x8xf32> to vector<4x8x1xf32>
    %105 = vector.broadcast %104 : vector<4x8x1xf32> to vector<4x8x8xf32>
    %106 = arith.subf %102, %105 : vector<4x8x8xf32>
    %107 = math.exp %106 : vector<4x8x8xf32>
    %cst_57 = arith.constant dense<0.000000e+00> : vector<4x8xf32>
    %108 = vector.multi_reduction <add>, %107, %cst_57 [2] : vector<4x8x8xf32> to vector<4x8xf32>
    %109 = vector.shape_cast %108 : vector<4x8xf32> to vector<4x8x1xf32>
    %110 = arith.truncf %107 : vector<4x8x8xf32> to vector<4x8x8xbf16>
    "tpu.trace_start"() <{level = 10 : i32, message = "bqk,bkd->bqd"}> : () -> ()
    %cst_58 = arith.constant dense<0.000000e+00> : vector<4x8x8xf32>
    %111 = tpu.matmul %110, %93, %cst_58 {dimension_numbers = #tpu.dot_dimension_numbers<[2], [1], [1], [2], [0, 0, 0, 1, 1, 2], [0], [0]>} : vector<4x8x8xbf16>, vector<4x8x8xbf16>, vector<4x8x8xf32> -> vector<4x8x8xf32>
    "tpu.trace_stop"() : () -> ()
    %112 = tpu.reciprocal %109 {approx = true} : vector<4x8x1xf32> -> vector<4x8x1xf32>
    %113 = vector.broadcast %112 : vector<4x8x1xf32> to vector<4x8x8xf32>
    %114 = arith.mulf %111, %113 : vector<4x8x8xf32>
    %115 = vector.extract_strided_slice %114 {offsets = [0, 0, 0], sizes = [1, 8, 8], strides = [1, 1, 1]} : vector<4x8x8xf32> to vector<1x8x8xf32>
    %116 = vector.shape_cast %115 : vector<1x8x8xf32> to vector<8x8xf32>
    %117 = arith.truncf %116 : vector<8x8xf32> to vector<8x8xbf16>
    %c0_59 = arith.constant 0 : index
    %c0_60 = arith.constant 0 : index
    %118 = vector.load %arg17[%c0_59, %c0_60] : memref<8x32xbf16, #tpu.memory_space<vmem>>, vector<8x8xbf16>
    tpu.vector_store %arg17[%c0_59, %c0_60], %117 {strides = array<i32>} : memref<8x32xbf16, #tpu.memory_space<vmem>>, vector<8x8xbf16>,
    %119 = vector.extract_strided_slice %114 {offsets = [1, 0, 0], sizes = [1, 8, 8], strides = [1, 1, 1]} : vector<4x8x8xf32> to vector<1x8x8xf32>
    %120 = vector.shape_cast %119 : vector<1x8x8xf32> to vector<8x8xf32>
    %121 = arith.truncf %120 : vector<8x8xf32> to vector<8x8xbf16>
    %c0_61 = arith.constant 0 : index
    %c8 = arith.constant 8 : index
    %122 = vector.load %arg17[%c0_61, %c8] : memref<8x32xbf16, #tpu.memory_space<vmem>>, vector<8x8xbf16>
    tpu.vector_store %arg17[%c0_61, %c8], %121 {strides = array<i32>} : memref<8x32xbf16, #tpu.memory_space<vmem>>, vector<8x8xbf16>,
    %123 = vector.extract_strided_slice %114 {offsets = [2, 0, 0], sizes = [1, 8, 8], strides = [1, 1, 1]} : vector<4x8x8xf32> to vector<1x8x8xf32>
    %124 = vector.shape_cast %123 : vector<1x8x8xf32> to vector<8x8xf32>
    %125 = arith.truncf %124 : vector<8x8xf32> to vector<8x8xbf16>
    %c0_62 = arith.constant 0 : index
    %c16 = arith.constant 16 : index
    %126 = vector.load %arg17[%c0_62, %c16] : memref<8x32xbf16, #tpu.memory_space<vmem>>, vector<8x8xbf16>
    tpu.vector_store %arg17[%c0_62, %c16], %125 {strides = array<i32>} : memref<8x32xbf16, #tpu.memory_space<vmem>>, vector<8x8xbf16>,
    %127 = vector.extract_strided_slice %114 {offsets = [3, 0, 0], sizes = [1, 8, 8], strides = [1, 1, 1]} : vector<4x8x8xf32> to vector<1x8x8xf32>
    %128 = vector.shape_cast %127 : vector<1x8x8xf32> to vector<8x8xf32>
    %129 = arith.truncf %128 : vector<8x8xf32> to vector<8x8xbf16>
    %c0_63 = arith.constant 0 : index
    %c24 = arith.constant 24 : index
    %130 = vector.load %arg17[%c0_63, %c24] : memref<8x32xbf16, #tpu.memory_space<vmem>>, vector<8x8xbf16>
    tpu.vector_store %arg17[%c0_63, %c24], %129 {strides = array<i32>} : memref<8x32xbf16, #tpu.memory_space<vmem>>, vector<8x8xbf16>,
    %c0_64 = arith.constant 0 : index
    %c0_65 = arith.constant 0 : index
    %131 = vector.load %arg17[%c0_64, %c0_65] : memref<8x32xbf16, #tpu.memory_space<vmem>>, vector<8x32xbf16>
    %c0_66 = arith.constant 0 : index
    %c0_67 = arith.constant 0 : index
    %132 = vector.load %arg3[%c0_66, %c0_67] : memref<32x32xbf16, #tpu.memory_space<vmem>>, vector<32x32xbf16>
    %cst_68 = arith.constant dense<0.000000e+00> : vector<8x32xf32>
    %133 = tpu.matmul %131, %132, %cst_68 {dimension_numbers = #tpu.dot_dimension_numbers<[1], [0], [0], [1], [0, 0, 1, 1], [], []>} : vector<8x32xbf16>, vector<32x32xbf16>, vector<8x32xf32> -> vector<8x32xf32>
    %c0_69 = arith.constant 0 : index
    %c0_70 = arith.constant 0 : index
    %134 = vector.load %arg4[%c0_69, %c0_70] : memref<1x32xf32, #tpu.memory_space<vmem>>, vector<1x32xf32>
    %135 = vector.broadcast %134 : vector<1x32xf32> to vector<8x32xf32>
    %136 = arith.addf %133, %135 : vector<8x32xf32>
    %137 = arith.addf %0, %136 : vector<8x32xf32>
    %c0_71 = arith.constant 0 : index
    %c0_72 = arith.constant 0 : index
    %138 = vector.load %arg7[%c0_71, %c0_72] : memref<1x32xf32, #tpu.memory_space<vmem>>, vector<1x32xf32>
    %c0_73 = arith.constant 0 : index
    %c0_74 = arith.constant 0 : index
    %139 = vector.load %arg8[%c0_73, %c0_74] : memref<1x32xf32, #tpu.memory_space<vmem>>, vector<1x32xf32>
    %cst_75 = arith.constant dense<0.000000e+00> : vector<8xf32>
    %140 = vector.multi_reduction <add>, %137, %cst_75 [1] : vector<8x32xf32> to vector<8xf32>
    %141 = vector.shape_cast %140 : vector<8xf32> to vector<8x1xf32>
    %cst_76 = arith.constant 3.200000e+01 : f32
    %142 = vector.broadcast %cst_76 : f32 to vector<8x1xf32>
    %143 = arith.divf %141, %142 : vector<8x1xf32>
    %144 = vector.broadcast %143 : vector<8x1xf32> to vector<8x32xf32>
    %145 = arith.subf %137, %144 : vector<8x32xf32>
    %146 = arith.mulf %145, %145 : vector<8x32xf32>
    %cst_77 = arith.constant dense<0.000000e+00> : vector<8xf32>
    %147 = vector.multi_reduction <add>, %146, %cst_77 [1] : vector<8x32xf32> to vector<8xf32>
    %148 = vector.shape_cast %147 : vector<8xf32> to vector<8x1xf32>
    %cst_78 = arith.constant 3.200000e+01 : f32
    %149 = vector.broadcast %cst_78 : f32 to vector<8x1xf32>
    %150 = arith.divf %148, %149 : vector<8x1xf32>
    %151 = vector.broadcast %143 : vector<8x1xf32> to vector<8x32xf32>
    %152 = arith.subf %137, %151 : vector<8x32xf32>
    %cst_79 = arith.constant 9.99999974E-6 : f32
    %153 = vector.broadcast %cst_79 : f32 to vector<8x1xf32>
    %154 = arith.addf %150, %153 : vector<8x1xf32>
    %155 = math.rsqrt %154 : vector<8x1xf32>
    %156 = vector.broadcast %155 : vector<8x1xf32> to vector<8x32xf32>
    %157 = arith.mulf %152, %156 : vector<8x32xf32>
    %158 = vector.broadcast %138 : vector<1x32xf32> to vector<8x32xf32>
    %159 = arith.mulf %157, %158 : vector<8x32xf32>
    %160 = vector.broadcast %139 : vector<1x32xf32> to vector<8x32xf32>
    %161 = arith.addf %159, %160 : vector<8x32xf32>
    %162 = arith.truncf %161 : vector<8x32xf32> to vector<8x32xbf16>
    %cst_80 = arith.constant 0.000000e+00 : f32
    %163 = vector.broadcast %cst_80 : f32 to vector<8x32xf32>
    %c0_81 = arith.constant 0 : index
    %c0_82 = arith.constant 0 : index
    %164 = vector.load %arg9[%c0_81, %c0_82] : memref<32x128xbf16, #tpu.memory_space<vmem>>, vector<32x128xbf16>
    %cst_83 = arith.constant dense<0.000000e+00> : vector<8x128xf32>
    %165 = tpu.matmul %162, %164, %cst_83 {dimension_numbers = #tpu.dot_dimension_numbers<[1], [0], [0], [1], [0, 0, 1, 1], [], []>} : vector<8x32xbf16>, vector<32x128xbf16>, vector<8x128xf32> -> vector<8x128xf32>
    %c0_84 = arith.constant 0 : index
    %c0_85 = arith.constant 0 : index
    %166 = vector.load %arg10[%c0_84, %c0_85] : memref<1x128xf32, #tpu.memory_space<vmem>>, vector<1x128xf32>
    %167 = vector.broadcast %166 : vector<1x128xf32> to vector<8x128xf32>
    %168 = arith.addf %165, %167 : vector<8x128xf32>
    %cst_86 = arith.constant 0.000000e+00 : f32
    %169 = vector.broadcast %cst_86 : f32 to vector<8x128xf32>
    %170 = arith.maximumf %168, %169 : vector<8x128xf32>
    %171 = arith.truncf %170 : vector<8x128xf32> to vector<8x128xbf16>
    %c0_87 = arith.constant 0 : index
    %c0_88 = arith.constant 0 : index
    %172 = vector.load %arg11[%c0_87, %c0_88] : memref<128x32xbf16, #tpu.memory_space<vmem>>, vector<128x32xbf16>
    %cst_89 = arith.constant dense<0.000000e+00> : vector<8x32xf32>
    %173 = tpu.matmul %171, %172, %cst_89 {dimension_numbers = #tpu.dot_dimension_numbers<[1], [0], [0], [1], [0, 0, 1, 1], [], []>} : vector<8x128xbf16>, vector<128x32xbf16>, vector<8x32xf32> -> vector<8x32xf32>
    %174 = arith.addf %163, %173 : vector<8x32xf32>
    %c0_90 = arith.constant 0 : index
    %c0_91 = arith.constant 0 : index
    %175 = vector.load %arg12[%c0_90, %c0_91] : memref<1x32xf32, #tpu.memory_space<vmem>>, vector<1x32xf32>
    %176 = vector.broadcast %175 : vector<1x32xf32> to vector<8x32xf32>
    %177 = arith.addf %174, %176 : vector<8x32xf32>
    %178 = arith.addf %137, %177 : vector<8x32xf32>
    %c0_92 = arith.constant 0 : index
    %c0_93 = arith.constant 0 : index
    %179 = vector.load %arg13[%c0_92, %c0_93] : memref<8x32xf32, #tpu.memory_space<vmem>>, vector<8x32xf32>
    tpu.vector_store %arg13[%c0_92, %c0_93], %178 {strides = array<i32>} : memref<8x32xf32, #tpu.memory_space<vmem>>, vector<8x32xf32>,
    return
  }
  func.func @transform_0(%arg0: i32) -> (i32, i32) {
    %c0_i32 = arith.constant 0 : i32
    %c0_i32_0 = arith.constant 0 : i32
    return %arg0, %c0_i32 : i32, i32
  }
  func.func @transform_1(%arg0: i32) -> (i32, i32) {
    %c0_i32 = arith.constant 0 : i32
    %c0_i32_0 = arith.constant 0 : i32
    %c0_i32_1 = arith.constant 0 : i32
    return %c0_i32, %c0_i32_0 : i32, i32
  }
  func.func @transform_2(%arg0: i32) -> (i32, i32) {
    %c0_i32 = arith.constant 0 : i32
    %c0_i32_0 = arith.constant 0 : i32
    %c0_i32_1 = arith.constant 0 : i32
    return %c0_i32, %c0_i32_0 : i32, i32
  }
  func.func @transform_3(%arg0: i32) -> (i32, i32) {
    %c0_i32 = arith.constant 0 : i32
    %c0_i32_0 = arith.constant 0 : i32
    %c0_i32_1 = arith.constant 0 : i32
    return %c0_i32, %c0_i32_0 : i32, i32
  }
  func.func @transform_4(%arg0: i32) -> (i32, i32) {
    %c0_i32 = arith.constant 0 : i32
    %c0_i32_0 = arith.constant 0 : i32
    %c0_i32_1 = arith.constant 0 : i32
    return %c0_i32, %c0_i32_0 : i32, i32
  }
  func.func @transform_5(%arg0: i32) -> (i32, i32) {
    %c0_i32 = arith.constant 0 : i32
    %c0_i32_0 = arith.constant 0 : i32
    %c0_i32_1 = arith.constant 0 : i32
    return %c0_i32, %c0_i32_0 : i32, i32
  }
  func.func @transform_6(%arg0: i32) -> (i32, i32) {
    %c0_i32 = arith.constant 0 : i32
    %c0_i32_0 = arith.constant 0 : i32
    %c0_i32_1 = arith.constant 0 : i32
    return %c0_i32, %c0_i32_0 : i32, i32
  }
  func.func @transform_7(%arg0: i32) -> (i32, i32) {
    %c0_i32 = arith.constant 0 : i32
    %c0_i32_0 = arith.constant 0 : i32
    %c0_i32_1 = arith.constant 0 : i32
    return %c0_i32, %c0_i32_0 : i32, i32
  }
  func.func @transform_8(%arg0: i32) -> (i32, i32) {
    %c0_i32 = arith.constant 0 : i32
    %c0_i32_0 = arith.constant 0 : i32
    %c0_i32_1 = arith.constant 0 : i32
    return %c0_i32, %c0_i32_0 : i32, i32
  }
  func.func @transform_9(%arg0: i32) -> (i32, i32) {
    %c0_i32 = arith.constant 0 : i32
    %c0_i32_0 = arith.constant 0 : i32
    %c0_i32_1 = arith.constant 0 : i32
    return %c0_i32, %c0_i32_0 : i32, i32
  }
  func.func @transform_10(%arg0: i32) -> (i32, i32) {
    %c0_i32 = arith.constant 0 : i32
    %c0_i32_0 = arith.constant 0 : i32
    %c0_i32_1 = arith.constant 0 : i32
    return %c0_i32, %c0_i32_0 : i32, i32
  }
  func.func @transform_11(%arg0: i32) -> (i32, i32) {
    %c0_i32 = arith.constant 0 : i32
    %c0_i32_0 = arith.constant 0 : i32
    %c0_i32_1 = arith.constant 0 : i32
    return %c0_i32, %c0_i32_0 : i32, i32
  }
  func.func @transform_12(%arg0: i32) -> (i32, i32) {
    %c0_i32 = arith.constant 0 : i32
    %c0_i32_0 = arith.constant 0 : i32
    return %arg0, %c0_i32 : i32, i32
  }
}

</mosaic_0001>

<llo_original>
// kernel: tpu_custom_call.1
$region0: #{tpu_custom_call.1}
  #allocation0 [shape = 'u32[]', space=smem, size = 0x4, offset = 0x4, fixed_abs, tag = 'smem constant byte address 0x4 - core index']
  #allocation1 [shape = 'u32[72,128]{1,0:T(1,128)}', space=vmem, size = 0x9000, scoped, tag = 'internal scratch']
  #allocation2 [shape = 'bf16[4,8,8]{2,1,0:T(8,128)(2,1)}', space=vmem, size = 0x2000, scoped, tag = 'scratch operand']
  #allocation3 [shape = 'bf16[4,8,8]{2,1,0:T(8,128)(2,1)}', space=vmem, size = 0x2000, scoped, tag = 'scratch operand']
  #allocation4 [shape = 'bf16[4,8,8]{2,1,0:T(8,128)(2,1)}', space=vmem, size = 0x2000, scoped, tag = 'scratch operand']
  #allocation5 [shape = 'bf16[8,32]{1,0:T(8,128)(2,1)}', space=vmem, size = 0x800, scoped, tag = 'scratch operand']
  %s0 = inlined_call_operand.vmem [shape: f32[16,32], index: 0, kind: input, shape index: {}]
  %s1 = inlined_call_operand.vmem [shape: bf16[32,96], index: 1, kind: input, shape index: {}]
  %s2 = inlined_call_operand.vmem [shape: bf16[32,32], index: 2, kind: input, shape index: {}]
  %s3 = inlined_call_operand.vmem [shape: f32[1,32], index: 3, kind: input, shape index: {}]
  %s4 = inlined_call_operand.vmem [shape: f32[1,32], index: 4, kind: input, shape index: {}]
  %s5 = inlined_call_operand.vmem [shape: f32[1,32], index: 5, kind: input, shape index: {}]
  %s6 = inlined_call_operand.vmem [shape: f32[1,32], index: 6, kind: input, shape index: {}]
  %s7 = inlined_call_operand.vmem [shape: f32[1,32], index: 7, kind: input, shape index: {}]
  %s8 = inlined_call_operand.vmem [shape: bf16[32,128], index: 8, kind: input, shape index: {}]
  %s9 = inlined_call_operand.vmem [shape: f32[1,128], index: 9, kind: input, shape index: {}]
  %s10 = inlined_call_operand.vmem [shape: bf16[128,32], index: 10, kind: input, shape index: {}]
  %s11 = inlined_call_operand.vmem [shape: f32[1,32], index: 11, kind: input, shape index: {}]
  %s12 = inlined_call_operand.hbm [shape: f32[16,32], index: 12, kind: output, shape index: {}]
  %s13 = sld [smem:[#allocation0]]
  $region81: #{tpu_custom_call.1} parent=0
    _
  %s15 = ssub.s32 1, %s13
  %s16 = scalar_select 0, %s15, %s13
  $region1: #{tpu_custom_call.1} parent=0
    #allocation6 [shape = 'u8[8192]{0}', space=vmem, size = 0x2000, scoped, tag = 'output window, operand 0']
    #allocation7 [shape = 's32[2]{0}', space=sflag, size = 0x8, scoped, tag = 'scoped memory for tpu_custom_call.1']
    %17 = vsyncpa [#allocation7], 0
    %s18 = scalar_lea.sflag [#allocation7], 1
    %19 = vsyncpa %s18, 0
    loop: start=0, step=1, limit=4
    $region2: #{tpu_custom_call.1} parent=1 // loop_pre_header
      _
    $region3: #{tpu_custom_call.1} parent=1 // loop_header
      %s21 = sphi 0, %s25
      %p22 = scmp.ge.s32.totalorder %s21, 4
      %s31 = sphi 0, %s33
      %s34 = sphi 0, %s31
      %s35 = sphi 0, %s34
      %s51 = sphi 0, %s35
      %s55 = sphi 0, %s55
      %s57 = sphi 0, %s55
      %s58 = sphi 0, %s57
      %s72 = sphi 0, %s58
      %s76 = sphi 0, %s76
      %s78 = sphi 0, %s76
      %s79 = sphi 0, %s78
      %s93 = sphi 0, %s79
      %s97 = sphi 0, %s97
      %s99 = sphi 0, %s97
      %s100 = sphi 0, %s99
      %s114 = sphi 0, %s100
      %s118 = sphi 0, %s118
      %s120 = sphi 0, %s118
      %s121 = sphi 0, %s120
      %s135 = sphi 0, %s121
      %s139 = sphi 0, %s139
      %s141 = sphi 0, %s139
      %s142 = sphi 0, %s141
      %s156 = sphi 0, %s142
      %s160 = sphi 0, %s160
      %s162 = sphi 0, %s160
      %s163 = sphi 0, %s162
      %s177 = sphi 0, %s163
      %s181 = sphi 0, %s181
      %s183 = sphi 0, %s181
      %s184 = sphi 0, %s183
      %s198 = sphi 0, %s184
      %s202 = sphi 0, %s202
      %s204 = sphi 0, %s202
      %s205 = sphi 0, %s204
      %s219 = sphi 0, %s205
      %s223 = sphi 0, %s223
      %s225 = sphi 0, %s223
      %s226 = sphi 0, %s225
      %s240 = sphi 0, %s226
      %s244 = sphi 0, %s244
      %s246 = sphi 0, %s244
      %s247 = sphi 0, %s246
      %s261 = sphi 0, %s247
      %s265 = sphi 0, %s265
      %s267 = sphi 0, %s265
      %s268 = sphi 0, %s267
      %s282 = sphi 0, %s268
      %s288 = sphi 0, %s290
      %s291 = sphi 0, %s288
      %s292 = sphi 0, %s291
      %s308 = sphi 0, %s292
    $region4: #{tpu_custom_call.1} parent=1 // loop_header_branch
      %24 = sbr.rel (%p22) target = $region8
    $region5: #{tpu_custom_call.1} parent=1 // loop_body
      %s26 = ssub.s32 %s21, 1
      %s27 = ssub.s32 %s21, 2
      %s28 = sadd.s32 %s21, 1
      %s29 = ssub.s32 %s21, %s28
      %p30 = scmp.eq.s32.totalorder %s29, 0
      %s32 = sadd.s32 %s31, 1
      %s33 = scalar_select %p30, %s31, %s32
      %p36 = pneg %p30
      %p37 = scmp.eq.s32.totalorder %s21, 1
      %p38 = por %p36, %p37
      %p39 = scmp.ne.s32.totalorder %s31, %s34
      %p40 = scmp.eq.s32.totalorder %s21, 0
      %p41 = por %p39, %p40
      %p42 = scmp.ne.s32.totalorder %s31, %s34
      %p43 = scmp.eq.s32.totalorder %s26, 1
      %p44 = por %p42, %p43
      %p45 = scmp.ne.s32.totalorder %s34, %s35
      %p46 = scmp.eq.s32.totalorder %s26, 0
      %p47 = por %p45, %p46
      %p48 = scmp.ne.s32.totalorder %s34, %s35
      %p49 = scmp.eq.s32.totalorder %s27, 1
      %p50 = por %p48, %p49
      %p52 = scmp.ne.s32.totalorder %s35, %s51
      %p53 = scmp.eq.s32.totalorder %s27, 0
      %p54 = por %p52, %p53
      %s56 = sadd.s32 %s55, 1
      %p59 = scmp.eq.s32.totalorder %s21, 1
      %p60 = scmp.ne.s32.totalorder %s55, %s57
      %p61 = scmp.eq.s32.totalorder %s21, 0
      %p62 = por %p60, %p61
      %p63 = scmp.ne.s32.totalorder %s55, %s57
      %p64 = scmp.eq.s32.totalorder %s26, 1
      %p65 = por %p63, %p64
      %p66 = scmp.ne.s32.totalorder %s57, %s58
      %p67 = scmp.eq.s32.totalorder %s26, 0
      %p68 = por %p66, %p67
      %p69 = scmp.ne.s32.totalorder %s57, %s58
      %p70 = scmp.eq.s32.totalorder %s27, 1
      %p71 = por %p69, %p70
      %p73 = scmp.ne.s32.totalorder %s58, %s72
      %p74 = scmp.eq.s32.totalorder %s27, 0
      %p75 = por %p73, %p74
      %s77 = sadd.s32 %s76, 1
      %p80 = scmp.eq.s32.totalorder %s21, 1
      %p81 = scmp.ne.s32.totalorder %s76, %s78
      %p82 = scmp.eq.s32.totalorder %s21, 0
      %p83 = por %p81, %p82
      %p84 = scmp.ne.s32.totalorder %s76, %s78
      %p85 = scmp.eq.s32.totalorder %s26, 1
      %p86 = por %p84, %p85
      %p87 = scmp.ne.s32.totalorder %s78, %s79
      %p88 = scmp.eq.s32.totalorder %s26, 0
      %p89 = por %p87, %p88
      %p90 = scmp.ne.s32.totalorder %s78, %s79
      %p91 = scmp.eq.s32.totalorder %s27, 1
      %p92 = por %p90, %p91
      %p94 = scmp.ne.s32.totalorder %s79, %s93
      %p95 = scmp.eq.s32.totalorder %s27, 0
      %p96 = por %p94, %p95
      %s98 = sadd.s32 %s97, 1
      %p101 = scmp.eq.s32.totalorder %s21, 1
      %p102 = scmp.ne.s32.totalorder %s97, %s99
      %p103 = scmp.eq.s32.totalorder %s21, 0
      %p104 = por %p102, %p103
      %p105 = scmp.ne.s32.totalorder %s97, %s99
      %p106 = scmp.eq.s32.totalorder %s26, 1
      %p107 = por %p105, %p106
      %p108 = scmp.ne.s32.totalorder %s99, %s100
      %p109 = scmp.eq.s32.totalorder %s26, 0
      %p110 = por %p108, %p109
      %p111 = scmp.ne.s32.totalorder %s99, %s100
      %p112 = scmp.eq.s32.totalorder %s27, 1
      %p113 = por %p111, %p112
      %p115 = scmp.ne.s32.totalorder %s100, %s114
      %p116 = scmp.eq.s32.totalorder %s27, 0
      %p117 = por %p115, %p116
      %s119 = sadd.s32 %s118, 1
      %p122 = scmp.eq.s32.totalorder %s21, 1
      %p123 = scmp.ne.s32.totalorder %s118, %s120
      %p124 = scmp.eq.s32.totalorder %s21, 0
      %p125 = por %p123, %p124
      %p126 = scmp.ne.s32.totalorder %s118, %s120
      %p127 = scmp.eq.s32.totalorder %s26, 1
      %p128 = por %p126, %p127
      %p129 = scmp.ne.s32.totalorder %s120, %s121
      %p130 = scmp.eq.s32.totalorder %s26, 0
      %p131 = por %p129, %p130
      %p132 = scmp.ne.s32.totalorder %s120, %s121
      %p133 = scmp.eq.s32.totalorder %s27, 1
      %p134 = por %p132, %p133
      %p136 = scmp.ne.s32.totalorder %s121, %s135
      %p137 = scmp.eq.s32.totalorder %s27, 0
      %p138 = por %p136, %p137
      %s140 = sadd.s32 %s139, 1
      %p143 = scmp.eq.s32.totalorder %s21, 1
      %p144 = scmp.ne.s32.totalorder %s139, %s141
      %p145 = scmp.eq.s32.totalorder %s21, 0
      %p146 = por %p144, %p145
      %p147 = scmp.ne.s32.totalorder %s139, %s141
      %p148 = scmp.eq.s32.totalorder %s26, 1
      %p149 = por %p147, %p148
      %p150 = scmp.ne.s32.totalorder %s141, %s142
      %p151 = scmp.eq.s32.totalorder %s26, 0
      %p152 = por %p150, %p151
      %p153 = scmp.ne.s32.totalorder %s141, %s142
      %p154 = scmp.eq.s32.totalorder %s27, 1
      %p155 = por %p153, %p154
      %p157 = scmp.ne.s32.totalorder %s142, %s156
      %p158 = scmp.eq.s32.totalorder %s27, 0
      %p159 = por %p157, %p158
      %s161 = sadd.s32 %s160, 1
      %p164 = scmp.eq.s32.totalorder %s21, 1
      %p165 = scmp.ne.s32.totalorder %s160, %s162
      %p166 = scmp.eq.s32.totalorder %s21, 0
      %p167 = por %p165, %p166
      %p168 = scmp.ne.s32.totalorder %s160, %s162
      %p169 = scmp.eq.s32.totalorder %s26, 1
      %p170 = por %p168, %p169
      %p171 = scmp.ne.s32.totalorder %s162, %s163
      %p172 = scmp.eq.s32.totalorder %s26, 0
      %p173 = por %p171, %p172
      %p174 = scmp.ne.s32.totalorder %s162, %s163
      %p175 = scmp.eq.s32.totalorder %s27, 1
      %p176 = por %p174, %p175
      %p178 = scmp.ne.s32.totalorder %s163, %s177
      %p179 = scmp.eq.s32.totalorder %s27, 0
      %p180 = por %p178, %p179
      %s182 = sadd.s32 %s181, 1
      %p185 = scmp.eq.s32.totalorder %s21, 1
      %p186 = scmp.ne.s32.totalorder %s181, %s183
      %p187 = scmp.eq.s32.totalorder %s21, 0
      %p188 = por %p186, %p187
      %p189 = scmp.ne.s32.totalorder %s181, %s183
      %p190 = scmp.eq.s32.totalorder %s26, 1
      %p191 = por %p189, %p190
      %p192 = scmp.ne.s32.totalorder %s183, %s184
      %p193 = scmp.eq.s32.totalorder %s26, 0
      %p194 = por %p192, %p193
      %p195 = scmp.ne.s32.totalorder %s183, %s184
      %p196 = scmp.eq.s32.totalorder %s27, 1
      %p197 = por %p195, %p196
      %p199 = scmp.ne.s32.totalorder %s184, %s198
      %p200 = scmp.eq.s32.totalorder %s27, 0
      %p201 = por %p199, %p200
      %s203 = sadd.s32 %s202, 1
      %p206 = scmp.eq.s32.totalorder %s21, 1
      %p207 = scmp.ne.s32.totalorder %s202, %s204
      %p208 = scmp.eq.s32.totalorder %s21, 0
      %p209 = por %p207, %p208
      %p210 = scmp.ne.s32.totalorder %s202, %s204
      %p211 = scmp.eq.s32.totalorder %s26, 1
      %p212 = por %p210, %p211
      %p213 = scmp.ne.s32.totalorder %s204, %s205
      %p214 = scmp.eq.s32.totalorder %s26, 0
      %p215 = por %p213, %p214
      %p216 = scmp.ne.s32.totalorder %s204, %s205
      %p217 = scmp.eq.s32.totalorder %s27, 1
      %p218 = por %p216, %p217
      %p220 = scmp.ne.s32.totalorder %s205, %s219
      %p221 = scmp.eq.s32.totalorder %s27, 0
      %p222 = por %p220, %p221
      %s224 = sadd.s32 %s223, 1
      %p227 = scmp.eq.s32.totalorder %s21, 1
      %p228 = scmp.ne.s32.totalorder %s223, %s225
      %p229 = scmp.eq.s32.totalorder %s21, 0
      %p230 = por %p228, %p229
      %p231 = scmp.ne.s32.totalorder %s223, %s225
      %p232 = scmp.eq.s32.totalorder %s26, 1
      %p233 = por %p231, %p232
      %p234 = scmp.ne.s32.totalorder %s225, %s226
      %p235 = scmp.eq.s32.totalorder %s26, 0
      %p236 = por %p234, %p235
      %p237 = scmp.ne.s32.totalorder %s225, %s226
      %p238 = scmp.eq.s32.totalorder %s27, 1
      %p239 = por %p237, %p238
      %p241 = scmp.ne.s32.totalorder %s226, %s240
      %p242 = scmp.eq.s32.totalorder %s27, 0
      %p243 = por %p241, %p242
      %s245 = sadd.s32 %s244, 1
      %p248 = scmp.eq.s32.totalorder %s21, 1
      %p249 = scmp.ne.s32.totalorder %s244, %s246
      %p250 = scmp.eq.s32.totalorder %s21, 0
      %p251 = por %p249, %p250
      %p252 = scmp.ne.s32.totalorder %s244, %s246
      %p253 = scmp.eq.s32.totalorder %s26, 1
      %p254 = por %p252, %p253
      %p255 = scmp.ne.s32.totalorder %s246, %s247
      %p256 = scmp.eq.s32.totalorder %s26, 0
      %p257 = por %p255, %p256
      %p258 = scmp.ne.s32.totalorder %s246, %s247
      %p259 = scmp.eq.s32.totalorder %s27, 1
      %p260 = por %p258, %p259
      %p262 = scmp.ne.s32.totalorder %s247, %s261
      %p263 = scmp.eq.s32.totalorder %s27, 0
      %p264 = por %p262, %p263
      %s266 = sadd.s32 %s265, 1
      %p269 = scmp.eq.s32.totalorder %s21, 1
      %p270 = scmp.ne.s32.totalorder %s265, %s267
      %p271 = scmp.eq.s32.totalorder %s21, 0
      %p272 = por %p270, %p271
      %p273 = scmp.ne.s32.totalorder %s265, %s267
      %p274 = scmp.eq.s32.totalorder %s26, 1
      %p275 = por %p273, %p274
      %p276 = scmp.ne.s32.totalorder %s267, %s268
      %p277 = scmp.eq.s32.totalorder %s26, 0
      %p278 = por %p276, %p277
      %p279 = scmp.ne.s32.totalorder %s267, %s268
      %p280 = scmp.eq.s32.totalorder %s27, 1
      %p281 = por %p279, %p280
      %p283 = scmp.ne.s32.totalorder %s268, %s282
      %p284 = scmp.eq.s32.totalorder %s27, 0
      %p285 = por %p283, %p284
      %s286 = ssub.s32 %s21, %s28
      %p287 = scmp.eq.s32.totalorder %s286, 0
      %s289 = sadd.s32 %s288, 1
      %s290 = scalar_select %p287, %s288, %s289
      %p293 = pneg %p287
      %p294 = scmp.eq.s32.totalorder %s21, 1
      %p295 = por %p293, %p294
      %p296 = scmp.ne.s32.totalorder %s288, %s291
      %p297 = scmp.eq.s32.totalorder %s21, 0
      %p298 = por %p296, %p297
      %p299 = scmp.ne.s32.totalorder %s288, %s291
      %p300 = scmp.eq.s32.totalorder %s26, 1
      %p301 = por %p299, %p300
      %p302 = scmp.ne.s32.totalorder %s291, %s292
      %p303 = scmp.eq.s32.totalorder %s26, 0
      %p304 = por %p302, %p303
      %p305 = scmp.ne.s32.totalorder %s291, %s292
      %p306 = scmp.eq.s32.totalorder %s27, 1
      %p307 = por %p305, %p306
      %p309 = scmp.ne.s32.totalorder %s292, %s308
      %p310 = scmp.eq.s32.totalorder %s27, 0
      %p311 = por %p309, %p310
      %p312 = scmp.le.s32.totalorder 1, %s21
      %p313 = scmp.lt.s32.totalorder %s21, 3
      %p314 = pnand %p312, %p313
      %p315 = pneg %p314
      // Predicated region
      $region9: #{tpu_custom_call.1} parent=5 // pred_check
        _
      $region10: #{tpu_custom_call.1} parent=5 // pred_check_branch
        %317 = sbr.rel (%p314) target = $region12
      $region11: #{tpu_custom_call.1} parent=5 // pred_region
        %s318 = ssub.s32 %s21, 1
        // Predicated region
        $region13: #{tpu_custom_call.1} parent=11 // pred_check
          %p319 = pneg %p68
        $region14: #{tpu_custom_call.1} parent=11 // pred_check_branch
          %321 = sbr.rel (%p319) target = $region16
        $region15: #{tpu_custom_call.1} parent=11 // pred_region
          _
        $region16: #{tpu_custom_call.1} parent=11 // pred_fallthru
          _
        // Predicated region
        $region17: #{tpu_custom_call.1} parent=11 // pred_check
          %p322 = pneg %p89
        $region18: #{tpu_custom_call.1} parent=11 // pred_check_branch
          %324 = sbr.rel (%p322) target = $region20
        $region19: #{tpu_custom_call.1} parent=11 // pred_region
          _
        $region20: #{tpu_custom_call.1} parent=11 // pred_fallthru
          _
        // Predicated region
        $region21: #{tpu_custom_call.1} parent=11 // pred_check
          %p325 = pneg %p110
        $region22: #{tpu_custom_call.1} parent=11 // pred_check_branch
          %327 = sbr.rel (%p325) target = $region24
        $region23: #{tpu_custom_call.1} parent=11 // pred_region
          _
        $region24: #{tpu_custom_call.1} parent=11 // pred_fallthru
          _
        // Predicated region
        $region25: #{tpu_custom_call.1} parent=11 // pred_check
          %p328 = pneg %p131
        $region26: #{tpu_custom_call.1} parent=11 // pred_check_branch
          %330 = sbr.rel (%p328) target = $region28
        $region27: #{tpu_custom_call.1} parent=11 // pred_region
          _
        $region28: #{tpu_custom_call.1} parent=11 // pred_fallthru
          _
        // Predicated region
        $region29: #{tpu_custom_call.1} parent=11 // pred_check
          %p331 = pneg %p152
        $region30: #{tpu_custom_call.1} parent=11 // pred_check_branch
          %333 = sbr.rel (%p331) target = $region32
        $region31: #{tpu_custom_call.1} parent=11 // pred_region
          _
        $region32: #{tpu_custom_call.1} parent=11 // pred_fallthru
          _
        // Predicated region
        $region33: #{tpu_custom_call.1} parent=11 // pred_check
          %p334 = pneg %p173
        $region34: #{tpu_custom_call.1} parent=11 // pred_check_branch
          %336 = sbr.rel (%p334) target = $region36
        $region35: #{tpu_custom_call.1} parent=11 // pred_region
          _
        $region36: #{tpu_custom_call.1} parent=11 // pred_fallthru
          _
        // Predicated region
        $region37: #{tpu_custom_call.1} parent=11 // pred_check
          %p337 = pneg %p194
        $region38: #{tpu_custom_call.1} parent=11 // pred_check_branch
          %339 = sbr.rel (%p337) target = $region40
        $region39: #{tpu_custom_call.1} parent=11 // pred_region
          _
        $region40: #{tpu_custom_call.1} parent=11 // pred_fallthru
          _
        // Predicated region
        $region41: #{tpu_custom_call.1} parent=11 // pred_check
          %p340 = pneg %p215
        $region42: #{tpu_custom_call.1} parent=11 // pred_check_branch
          %342 = sbr.rel (%p340) target = $region44
        $region43: #{tpu_custom_call.1} parent=11 // pred_region
          _
        $region44: #{tpu_custom_call.1} parent=11 // pred_fallthru
          _
        // Predicated region
        $region45: #{tpu_custom_call.1} parent=11 // pred_check
          %p343 = pneg %p236
        $region46: #{tpu_custom_call.1} parent=11 // pred_check_branch
          %345 = sbr.rel (%p343) target = $region48
        $region47: #{tpu_custom_call.1} parent=11 // pred_region
          _
        $region48: #{tpu_custom_call.1} parent=11 // pred_fallthru
          _
        // Predicated region
        $region49: #{tpu_custom_call.1} parent=11 // pred_check
          %p346 = pneg %p257
        $region50: #{tpu_custom_call.1} parent=11 // pred_check_branch
          %348 = sbr.rel (%p346) target = $region52
        $region51: #{tpu_custom_call.1} parent=11 // pred_region
          _
        $region52: #{tpu_custom_call.1} parent=11 // pred_fallthru
          _
        // Predicated region
        $region53: #{tpu_custom_call.1} parent=11 // pred_check
          %p349 = pneg %p278
        $region54: #{tpu_custom_call.1} parent=11 // pred_check_branch
          %351 = sbr.rel (%p349) target = $region56
        $region55: #{tpu_custom_call.1} parent=11 // pred_region
          _
        $region56: #{tpu_custom_call.1} parent=11 // pred_fallthru
          _
      $region12: #{tpu_custom_call.1} parent=5 // pred_fallthru
        _
      %p352 = scmp.lt.s32.totalorder %s21, 2
      // Predicated region
      $region57: #{tpu_custom_call.1} parent=5 // pred_check
        %p353 = pneg %p352
      $region58: #{tpu_custom_call.1} parent=5 // pred_check_branch
        %355 = sbr.rel (%p353) target = $region60
      $region59: #{tpu_custom_call.1} parent=5 // pred_region
        // Predicated region
        $region61: #{tpu_custom_call.1} parent=59 // pred_check
          %p356 = pneg %p41
        $region62: #{tpu_custom_call.1} parent=59 // pred_check_branch
          %358 = sbr.rel (%p356) target = $region64
        $region63: #{tpu_custom_call.1} parent=59 // pred_region
          %p359 = scmp.lt.s32.totalorder %s21, 1
          %s360 = scalar_select %p359, %s21, 1
          %s361 = smul.addr %s360, 8
          %s362 = scalar_lea.vmem %s0, %s361
        $region64: #{tpu_custom_call.1} parent=59 // pred_fallthru
          _
      $region60: #{tpu_custom_call.1} parent=5 // pred_fallthru
        _
      %p363 = scmp.le.s32.totalorder 1, %s21
      %p364 = scmp.lt.s32.totalorder %s21, 3
      %p365 = pnand %p363, %p364
      %p366 = pneg %p365
      // Predicated region
      $region65: #{tpu_custom_call.1} parent=5 // pred_check
        _
      $region66: #{tpu_custom_call.1} parent=5 // pred_check_branch
        %368 = sbr.rel (%p365) target = $region68
      $region67: #{tpu_custom_call.1} parent=5 // pred_region
        %s369 = ssub.s32 %s21, 1
        %p370 = scmp.lt.s32.totalorder %s26, 1
        %s371 = scalar_select %p370, %s26, 1
        %s372 = smul.addr %s371, 8
        %s373 = scalar_lea.vmem %s0, %s372
        %p374 = pneg %p47
        %p375 = pneg %p44
        %p376 = pneg %p68
        %p377 = pneg %p65
        %p378 = pneg %p89
        %p379 = pneg %p86
        %p380 = pneg %p110
        %p381 = pneg %p107
        %p382 = pneg %p131
        %p383 = pneg %p128
        %p384 = pneg %p152
        %p385 = pneg %p149
        %p386 = pneg %p173
        %p387 = pneg %p170
        %p388 = pneg %p194
        %p389 = pneg %p191
        %p390 = pneg %p215
        %p391 = pneg %p212
        %p392 = pneg %p236
        %p393 = pneg %p233
        %p394 = pneg %p257
        %p395 = pneg %p254
        %p396 = pneg %p278
        %p397 = pneg %p275
        %p398 = pneg %p304
        %p399 = pneg %p301
        %s400 = sand.u32 %s291, 1
        %s401 = scalar_lea.sflag [#allocation7], %s400
        %s402 = sand.u32 %s291, 1
        %s403 = smul.addr %s402, 8
        %s404 = scalar_lea.vmem [#allocation6], %s403
        %p405 = scmp.lt.s32.totalorder %s26, 1
        %s406 = scalar_select %p405, %s26, 1
        %s407 = smul.addr %s406, 8
        %s408 = scalar_lea.vmem %s0, %s407
        %v410 = vld [vmem:[%s408] sm:$0xff]
        %v411 = vld [vmem:[%s4] sm:$0x1]
        %v412 = vld [vmem:[%s5] sm:$0x1]
        %vm413 = vcmask 261120
        %v414 = vsel %vm413, %v410, 0.0
        %415 = vadd.xlane.f32.xlu0 %v414
        %v416 = vpop.xlane.xlu0 %415
        %v417 = vrcp.pop 32.0
        %v418 = vmul.f32 32.0, %v417
        %v419 = vsub.f32 1.0, %v418
        %v420 = vmul.f32 %v417, %v419
        %v421 = vadd.f32 %v417, %v420
        %vm422 = vweird.f32 %v417
        %v423 = vsel %vm422, %v417, %v421
        %v424 = vmul.f32 %v416, %v423
        %v425 = vsub.f32 %v410, %v424
        %v426 = vmul.f32 %v425, %v425
        %v427 = vsel %vm413, %v426, 0.0
        %428 = vadd.xlane.f32.xlu0 %v427
        %v429 = vpop.xlane.xlu0 %428
        %v430 = vmul.f32 %v429, %v423
        %v431 = vadd.f32 %v430, 1e-05
        %v432 = vrsqrt.pop %v431
        %v433 = vmul.f32 %v432, %v431
        %v434 = vmul.f32 %v433, %v432
        %v435 = vmul.f32 0.5, %v434
        %v436 = vsub.f32 1.5, %v435
        %v437 = vmul.f32 %v432, %v436
        %vm438 = vweird.f32 %v431
        %vm439 = vweird.f32 %v432
        %vm440 = vmor %vm438, %vm439
        %v441 = vsel %vm440, %v432, %v437
        %v442 = vmul.f32 %v425, %v441
        %v444 = vperm.slane %v411, 0
        %v446 = vmul.f32 %v442, %v444
        %v448 = vperm.slane %v412, 0
        %v450 = vadd.f32 %v446, %v448
        %v451 = vpack.c.bf16 %v450, %v450
        %v452 = vld [vmem:[%s1] sm:$0xf]
        %v453 = vld [vmem:[%s1 + $0x4] sm:$0xf]
        %v454 = vld [vmem:[%s1 + $0x8] sm:$0xf]
        %v455 = vld [vmem:[%s1 + $0xc] sm:$0xf]
        %v460 = vunpack.c.l.b16 %v452
        %v461 = vunpack.c.l.b16 %v453
        %v462 = vunpack.c.l.b16 %v454
        %v463 = vunpack.c.l.b16 %v455
        %v464 = vpack.c.b16 %v461, %v460
        %v465 = vpack.c.b16 %v463, %v462
        %v469 = vsel %vm413, %v451, 0
        %471 = vmatpush.bf16.msra.mxu0 0
        %472 = vmatpush.bf16.msra.mxu0 0
        %473 = vmatpush.bf16.msra.mxu0 0
        %474 = vmatpush.bf16.msra.mxu0 0
        %475 = vmatpush.bf16.msra.mxu0 0
        %476 = vmatpush.bf16.msra.mxu0 0
        %477 = vmatpush.bf16.msra.mxu0 %v465
        %478 = vmatpush.bf16.msra.mxu0 %v464
        %479 = vmatmul.bf16.gmra.mxu0 %v469
        %v480 = vpop.f32.mrf.mxu0
        %v481 = vadd.f32 0.0, %v480
        %v482 = vpop.f32.mrf.mxu0
        %483 = vdwg.mxu0
        %v484 = vpack.c.bf16 %v481, %v481
        %vm485 = vcmask 60416
        %486 = vst.msk [vmem:[#allocation2] sm:$0xf] %vm485, %v484
        %488 = vrot.lane.b32.xlu0 %v484, 96
        %v489 = vpop.permute.xlu0 %488
        %491 = vst.msk [vmem:[#allocation3] sm:$0xf] %vm485, %v489
        %492 = vrot.lane.b32.xlu0 %v484, 64
        %v493 = vpop.permute.xlu0 %492
        %495 = vst.msk [vmem:[#allocation4] sm:$0xf] %vm485, %v493
        %496 = vrot.lane.b32.xlu0 %v484, 120
        %v497 = vpop.permute.xlu0 %496
        %s499 = scalar_lea.vmem [#allocation2], 4
        %500 = vst.msk [vmem:[%s499] sm:$0xf] %vm485, %v497
        %501 = vrot.lane.b32.xlu0 %v484, 88
        %v502 = vpop.permute.xlu0 %501
        %s504 = scalar_lea.vmem [#allocation3], 4
        %505 = vst.msk [vmem:[%s504] sm:$0xf] %vm485, %v502
        %506 = vrot.lane.b32.xlu0 %v484, 56
        %v507 = vpop.permute.xlu0 %506
        %s509 = scalar_lea.vmem [#allocation4], 4
        %510 = vst.msk [vmem:[%s509] sm:$0xf] %vm485, %v507
        %511 = vrot.lane.b32.xlu0 %v484, 112
        %v512 = vpop.permute.xlu0 %511
        %s514 = scalar_lea.vmem [#allocation2], 8
        %515 = vst.msk [vmem:[%s514] sm:$0xf] %vm485, %v512
        %516 = vrot.lane.b32.xlu0 %v484, 80
        %v517 = vpop.permute.xlu0 %516
        %s519 = scalar_lea.vmem [#allocation3], 8
        %520 = vst.msk [vmem:[%s519] sm:$0xf] %vm485, %v517
        %521 = vrot.lane.b32.xlu0 %v484, 48
        %v522 = vpop.permute.xlu0 %521
        %s524 = scalar_lea.vmem [#allocation4], 8
        %525 = vst.msk [vmem:[%s524] sm:$0xf] %vm485, %v522
        %526 = vrot.lane.b32.xlu0 %v484, 104
        %v527 = vpop.permute.xlu0 %526
        %s529 = scalar_lea.vmem [#allocation2], 12
        %530 = vst.msk [vmem:[%s529] sm:$0xf] %vm485, %v527
        %531 = vrot.lane.b32.xlu0 %v484, 72
        %v532 = vpop.permute.xlu0 %531
        %s534 = scalar_lea.vmem [#allocation3], 12
        %535 = vst.msk [vmem:[%s534] sm:$0xf] %vm485, %v532
        %536 = vrot.lane.b32.xlu0 %v484, 40
        %v537 = vpop.permute.xlu0 %536
        %s539 = scalar_lea.vmem [#allocation4], 12
        %540 = vst.msk [vmem:[%s539] sm:$0xf] %vm485, %v537
        %v541 = vld [vmem:[#allocation2] sm:$0xf]
        %v542 = vld [vmem:[#allocation2 + $0x4] sm:$0xf]
        %v543 = vld [vmem:[#allocation2 + $0x8] sm:$0xf]
        %v544 = vld [vmem:[#allocation2 + $0xc] sm:$0xf]
        %v545 = vld [vmem:[#allocation3] sm:$0xf]
        %v546 = vld [vmem:[#allocation3 + $0x4] sm:$0xf]
        %v547 = vld [vmem:[#allocation3 + $0x8] sm:$0xf]
        %v548 = vld [vmem:[#allocation3 + $0xc] sm:$0xf]
        %v549 = vld [vmem:[#allocation4] sm:$0xf]
        %v550 = vld [vmem:[#allocation4 + $0x4] sm:$0xf]
        %v551 = vld [vmem:[#allocation4 + $0x8] sm:$0xf]
        %v552 = vld [vmem:[#allocation4 + $0xc] sm:$0xf]
        %vm553 = vcmask 64512
        %v555 = vsel %vm553, %v541, 0
        %v558 = vsel %vm553, %v545, 0
        %560 = vmatpush.bf16.xpose.msra.mxu0 0
        %561 = vmatpush.bf16.xpose.msra.mxu0 0
        %562 = vmatpush.bf16.xpose.msra.mxu0 0
        %563 = vmatpush.bf16.xpose.msra.mxu0 0
        %564 = vmatpush.bf16.xpose.msra.mxu0 0
        %565 = vmatpush.bf16.xpose.msra.mxu0 0
        %566 = vmatpush.bf16.xpose.msra.mxu0 0
        %567 = vmatpush.bf16.xpose.msra.mxu0 %v558
        %568 = vmatmul.bf16.gmra.mxu0 %v555
        %v569 = vpop.f32.mrf.mxu0
        %v570 = vadd.f32 0.0, %v569
        %v571 = vpop.f32.mrf.mxu0
        %572 = vdwg.mxu0
        %v574 = vsel %vm553, %v542, 0
        %v577 = vsel %vm553, %v546, 0
        %579 = vmatpush.bf16.xpose.msra.mxu0 0
        %580 = vmatpush.bf16.xpose.msra.mxu0 0
        %581 = vmatpush.bf16.xpose.msra.mxu0 0
        %582 = vmatpush.bf16.xpose.msra.mxu0 0
        %583 = vmatpush.bf16.xpose.msra.mxu0 0
        %584 = vmatpush.bf16.xpose.msra.mxu0 0
        %585 = vmatpush.bf16.xpose.msra.mxu0 0
        %586 = vmatpush.bf16.xpose.msra.mxu0 %v577
        %587 = vmatmul.bf16.gmra.mxu0 %v574
        %v588 = vpop.f32.mrf.mxu0
        %v589 = vadd.f32 0.0, %v588
        %v590 = vpop.f32.mrf.mxu0
        %591 = vdwg.mxu0
        %v593 = vsel %vm553, %v543, 0
        %v596 = vsel %vm553, %v547, 0
        %598 = vmatpush.bf16.xpose.msra.mxu0 0
        %599 = vmatpush.bf16.xpose.msra.mxu0 0
        %600 = vmatpush.bf16.xpose.msra.mxu0 0
        %601 = vmatpush.bf16.xpose.msra.mxu0 0
        %602 = vmatpush.bf16.xpose.msra.mxu0 0
        %603 = vmatpush.bf16.xpose.msra.mxu0 0
        %604 = vmatpush.bf16.xpose.msra.mxu0 0
        %605 = vmatpush.bf16.xpose.msra.mxu0 %v596
        %606 = vmatmul.bf16.gmra.mxu0 %v593
        %v607 = vpop.f32.mrf.mxu0
        %v608 = vadd.f32 0.0, %v607
        %v609 = vpop.f32.mrf.mxu0
        %610 = vdwg.mxu0
        %v612 = vsel %vm553, %v544, 0
        %v615 = vsel %vm553, %v548, 0
        %617 = vmatpush.bf16.xpose.msra.mxu0 0
        %618 = vmatpush.bf16.xpose.msra.mxu0 0
        %619 = vmatpush.bf16.xpose.msra.mxu0 0
        %620 = vmatpush.bf16.xpose.msra.mxu0 0
        %621 = vmatpush.bf16.xpose.msra.mxu0 0
        %622 = vmatpush.bf16.xpose.msra.mxu0 0
        %623 = vmatpush.bf16.xpose.msra.mxu0 0
        %624 = vmatpush.bf16.xpose.msra.mxu0 %v615
        %625 = vmatmul.bf16.gmra.mxu0 %v612
        %v626 = vpop.f32.mrf.mxu0
        %v627 = vadd.f32 0.0, %v626
        %v628 = vpop.f32.mrf.mxu0
        %629 = vdwg.mxu0
        %v630 = vlaneseq
        %v631 = vshrl.u32 %v630, 7
        %v632 = vlaneseq
        %v633 = vand.u32 %v632, 127
        %vm634 = vcmp.ge.s32.totalorder %v631, %v633
        %v635 = vsel %vm634, 1, 0
        %vm636 = vcmp.eq.s32.totalorder %v635, 1
        %v637 = vsel %vm636, %v570, -inf
        %v638 = vsel %vm636, %v589, -inf
        %v639 = vsel %vm636, %v608, -inf
        %v640 = vsel %vm636, %v627, -inf
        %v641 = vsel %vm553, %v637, -inf
        %642 = vmax.xlane.f32.xlu0 %v641
        %v643 = vpop.xlane.xlu0 %642
        %v644 = vsel %vm553, %v638, -inf
        %645 = vmax.xlane.f32.xlu0 %v644
        %v646 = vpop.xlane.xlu0 %645
        %v647 = vsel %vm553, %v639, -inf
        %648 = vmax.xlane.f32.xlu0 %v647
        %v649 = vpop.xlane.xlu0 %648
        %v650 = vsel %vm553, %v640, -inf
        %651 = vmax.xlane.f32.xlu0 %v650
        %v652 = vpop.xlane.xlu0 %651
        %v653 = vsub.f32 %v637, %v643
        %v654 = vsub.f32 %v638, %v646
        %v655 = vsub.f32 %v639, %v649
        %v656 = vsub.f32 %v640, %v652
        %v657 = vmul.f32 %v653, 1.442695
        %v658 = vpow.pop %v657
        %v659 = vmul.f32 %v654, 1.442695
        %v660 = vpow.pop %v659
        %v661 = vmul.f32 %v655, 1.442695
        %v662 = vpow.pop %v661
        %v663 = vmul.f32 %v656, 1.442695
        %v664 = vpow.pop %v663
        %v665 = vsel %vm553, %v658, 0.0
        %666 = vadd.xlane.f32.xlu0 %v665
        %v667 = vpop.xlane.xlu0 %666
        %v668 = vsel %vm553, %v660, 0.0
        %669 = vadd.xlane.f32.xlu0 %v668
        %v670 = vpop.xlane.xlu0 %669
        %v671 = vsel %vm553, %v662, 0.0
        %672 = vadd.xlane.f32.xlu0 %v671
        %v673 = vpop.xlane.xlu0 %672
        %v674 = vsel %vm553, %v664, 0.0
        %675 = vadd.xlane.f32.xlu0 %v674
        %v676 = vpop.xlane.xlu0 %675
        %v677 = vpack.c.bf16 %v658, %v658
        %v678 = vpack.c.bf16 %v660, %v660
        %v679 = vpack.c.bf16 %v662, %v662
        %v680 = vpack.c.bf16 %v664, %v664
        %v682 = vsel %vm553, %v677, 0
        %vm684 = vcmask 1043456
        %v686 = vsel %vm684, %v549, 0
        %688 = vmatpush.bf16.msra.mxu0 0
        %689 = vmatpush.bf16.msra.mxu0 0
        %690 = vmatpush.bf16.msra.mxu0 0
        %691 = vmatpush.bf16.msra.mxu0 0
        %692 = vmatpush.bf16.msra.mxu0 0
        %693 = vmatpush.bf16.msra.mxu0 0
        %694 = vmatpush.bf16.msra.mxu0 0
        %695 = vmatpush.bf16.msra.mxu0 %v686
        %696 = vmatmul.bf16.gmra.mxu0 %v682
        %v697 = vpop.f32.mrf.mxu0
        %v698 = vadd.f32 0.0, %v697
        %v699 = vpop.f32.mrf.mxu0
        %700 = vdwg.mxu0
        %v702 = vsel %vm553, %v678, 0
        %v705 = vsel %vm684, %v550, 0
        %707 = vmatpush.bf16.msra.mxu0 0
        %708 = vmatpush.bf16.msra.mxu0 0
        %709 = vmatpush.bf16.msra.mxu0 0
        %710 = vmatpush.bf16.msra.mxu0 0
        %711 = vmatpush.bf16.msra.mxu0 0
        %712 = vmatpush.bf16.msra.mxu0 0
        %713 = vmatpush.bf16.msra.mxu0 0
        %714 = vmatpush.bf16.msra.mxu0 %v705
        %715 = vmatmul.bf16.gmra.mxu0 %v702
        %v716 = vpop.f32.mrf.mxu0
        %v717 = vadd.f32 0.0, %v716
        %v718 = vpop.f32.mrf.mxu0
        %719 = vdwg.mxu0
        %v721 = vsel %vm553, %v679, 0
        %v724 = vsel %vm684, %v551, 0
        %726 = vmatpush.bf16.msra.mxu0 0
        %727 = vmatpush.bf16.msra.mxu0 0
        %728 = vmatpush.bf16.msra.mxu0 0
        %729 = vmatpush.bf16.msra.mxu0 0
        %730 = vmatpush.bf16.msra.mxu0 0
        %731 = vmatpush.bf16.msra.mxu0 0
        %732 = vmatpush.bf16.msra.mxu0 0
        %733 = vmatpush.bf16.msra.mxu0 %v724
        %734 = vmatmul.bf16.gmra.mxu0 %v721
        %v735 = vpop.f32.mrf.mxu0
        %v736 = vadd.f32 0.0, %v735
        %v737 = vpop.f32.mrf.mxu0
        %738 = vdwg.mxu0
        %v740 = vsel %vm553, %v680, 0
        %v743 = vsel %vm684, %v552, 0
        %745 = vmatpush.bf16.msra.mxu0 0
        %746 = vmatpush.bf16.msra.mxu0 0
        %747 = vmatpush.bf16.msra.mxu0 0
        %748 = vmatpush.bf16.msra.mxu0 0
        %749 = vmatpush.bf16.msra.mxu0 0
        %750 = vmatpush.bf16.msra.mxu0 0
        %751 = vmatpush.bf16.msra.mxu0 0
        %752 = vmatpush.bf16.msra.mxu0 %v743
        %753 = vmatmul.bf16.gmra.mxu0 %v740
        %v754 = vpop.f32.mrf.mxu0
        %v755 = vadd.f32 0.0, %v754
        %v756 = vpop.f32.mrf.mxu0
        %757 = vdwg.mxu0
        %v758 = vrcp.pop %v667
        %v759 = vrcp.pop %v670
        %v760 = vrcp.pop %v673
        %v761 = vrcp.pop %v676
        %v762 = vmul.f32 %v698, %v758
        %v763 = vmul.f32 %v717, %v759
        %v764 = vmul.f32 %v736, %v760
        %v765 = vmul.f32 %v755, %v761
        %v766 = vpack.c.bf16 %v762, %v762
        %767 = vst.msk [vmem:[#allocation5] sm:$0xf] %vm485, %v766
        %v768 = vpack.c.bf16 %v763, %v763
        %770 = vrot.lane.b32.xlu0 %v768, 8
        %v771 = vpop.permute.xlu0 %770
        %vm773 = vcmask 126016
        %774 = vst.msk [vmem:[#allocation5] sm:$0xf] %vm773, %v771
        %v775 = vpack.c.bf16 %v764, %v764
        %777 = vrot.lane.b32.xlu0 %v775, 16
        %v778 = vpop.permute.xlu0 %777
        %vm780 = vcmask 191616
        %781 = vst.msk [vmem:[#allocation5] sm:$0xf] %vm780, %v778
        %v782 = vpack.c.bf16 %v765, %v765
        %784 = vrot.lane.b32.xlu0 %v782, 24
        %v785 = vpop.permute.xlu0 %784
        %vm787 = vcmask 257216
        %788 = vst.msk [vmem:[#allocation5] sm:$0xf] %vm787, %v785
        %v789 = vld [vmem:[#allocation5] sm:$0xf]
        %v790 = vld [vmem:[%s2] sm:$0xf]
        %v791 = vld [vmem:[%s2 + $0x4] sm:$0xf]
        %v792 = vld [vmem:[%s2 + $0x8] sm:$0xf]
        %v793 = vld [vmem:[%s2 + $0xc] sm:$0xf]
        %v794 = vld [vmem:[%s3] sm:$0x1]
        %v796 = vperm.slane %v794, 0
        %v802 = vunpack.c.l.b16 %v790
        %v803 = vunpack.c.l.b16 %v791
        %v804 = vunpack.c.l.b16 %v792
        %v805 = vunpack.c.l.b16 %v793
        %v806 = vpack.c.b16 %v803, %v802
        %v807 = vpack.c.b16 %v805, %v804
        %v811 = vsel %vm413, %v789, 0
        %813 = vmatpush.bf16.msra.mxu0 0
        %814 = vmatpush.bf16.msra.mxu0 0
        %815 = vmatpush.bf16.msra.mxu0 0
        %816 = vmatpush.bf16.msra.mxu0 0
        %817 = vmatpush.bf16.msra.mxu0 0
        %818 = vmatpush.bf16.msra.mxu0 0
        %819 = vmatpush.bf16.msra.mxu0 %v807
        %820 = vmatpush.bf16.msra.mxu0 %v806
        %821 = vmatmul.bf16.gmra.mxu0 %v811
        %v822 = vpop.f32.mrf.mxu0
        %v823 = vadd.f32 %v796, %v822
        %v824 = vpop.f32.mrf.mxu0
        %825 = vdwg.mxu0
        %v826 = vadd.f32 %v410, %v823
        %v827 = vld [vmem:[%s6] sm:$0x1]
        %v828 = vld [vmem:[%s7] sm:$0x1]
        %v829 = vsel %vm413, %v826, 0.0
        %830 = vadd.xlane.f32.xlu0 %v829
        %v831 = vpop.xlane.xlu0 %830
        %v832 = vmul.f32 %v831, %v423
        %v833 = vsub.f32 %v826, %v832
        %v834 = vmul.f32 %v833, %v833
        %v835 = vsel %vm413, %v834, 0.0
        %836 = vadd.xlane.f32.xlu0 %v835
        %v837 = vpop.xlane.xlu0 %836
        %v838 = vmul.f32 %v837, %v423
        %v839 = vadd.f32 %v838, 1e-05
        %v840 = vrsqrt.pop %v839
        %v841 = vmul.f32 %v840, %v839
        %v842 = vmul.f32 %v841, %v840
        %v843 = vmul.f32 0.5, %v842
        %v844 = vsub.f32 1.5, %v843
        %v845 = vmul.f32 %v840, %v844
        %vm846 = vweird.f32 %v839
        %vm847 = vweird.f32 %v840
        %vm848 = vmor %vm846, %vm847
        %v849 = vsel %vm848, %v840, %v845
        %v850 = vmul.f32 %v833, %v849
        %v852 = vperm.slane %v827, 0
        %v854 = vmul.f32 %v850, %v852
        %v856 = vperm.slane %v828, 0
        %v858 = vadd.f32 %v854, %v856
        %v859 = vpack.c.bf16 %v858, %v858
        %v860 = vld [vmem:[%s8] sm:$0xf]
        %v861 = vld [vmem:[%s8 + $0x4] sm:$0xf]
        %v862 = vld [vmem:[%s8 + $0x8] sm:$0xf]
        %v863 = vld [vmem:[%s8 + $0xc] sm:$0xf]
        %v864 = vld [vmem:[%s9] sm:$0x1]
        %v866 = vperm.slane %v864, 0
        %v872 = vunpack.c.l.b16 %v860
        %v873 = vunpack.c.l.b16 %v861
        %v874 = vunpack.c.l.b16 %v862
        %v875 = vunpack.c.l.b16 %v863
        %v876 = vpack.c.b16 %v873, %v872
        %v877 = vpack.c.b16 %v875, %v874
        %v881 = vsel %vm413, %v859, 0
        %883 = vmatpush.bf16.msra.mxu0 0
        %884 = vmatpush.bf16.msra.mxu0 0
        %885 = vmatpush.bf16.msra.mxu0 0
        %886 = vmatpush.bf16.msra.mxu0 0
        %887 = vmatpush.bf16.msra.mxu0 0
        %888 = vmatpush.bf16.msra.mxu0 0
        %889 = vmatpush.bf16.msra.mxu0 %v877
        %890 = vmatpush.bf16.msra.mxu0 %v876
        %891 = vmatmul.bf16.gmra.mxu0 %v881
        %v892 = vpop.f32.mrf.mxu0
        %v893 = vadd.f32 %v866, %v892
        %v894 = vpop.f32.mrf.mxu0
        %895 = vdwg.mxu0
        %v896 = vmax.f32 %v893, 0.0
        %v897 = vpack.c.bf16 %v896, %v896
        %v898 = vld [vmem:[%s10] sm:$0xf]
        %v899 = vld [vmem:[%s10 + $0x4] sm:$0xf]
        %v900 = vld [vmem:[%s10 + $0x8] sm:$0xf]
        %v901 = vld [vmem:[%s10 + $0xc] sm:$0xf]
        %v902 = vld [vmem:[%s10 + $0x10] sm:$0xf]
        %v903 = vld [vmem:[%s10 + $0x14] sm:$0xf]
        %v904 = vld [vmem:[%s10 + $0x18] sm:$0xf]
        %v905 = vld [vmem:[%s10 + $0x1c] sm:$0xf]
        %v906 = vld [vmem:[%s10 + $0x20] sm:$0xf]
        %v907 = vld [vmem:[%s10 + $0x24] sm:$0xf]
        %v908 = vld [vmem:[%s10 + $0x28] sm:$0xf]
        %v909 = vld [vmem:[%s10 + $0x2c] sm:$0xf]
        %v910 = vld [vmem:[%s10 + $0x30] sm:$0xf]
        %v911 = vld [vmem:[%s10 + $0x34] sm:$0xf]
        %v912 = vld [vmem:[%s10 + $0x38] sm:$0xf]
        %v913 = vld [vmem:[%s10 + $0x3c] sm:$0xf]
        %v914 = vld [vmem:[%s11] sm:$0x1]
        %v916 = vperm.slane %v914, 0
        %v934 = vunpack.c.l.b16 %v898
        %v935 = vunpack.c.l.b16 %v899
        %v936 = vunpack.c.l.b16 %v900
        %v937 = vunpack.c.l.b16 %v901
        %v938 = vunpack.c.l.b16 %v902
        %v939 = vunpack.c.l.b16 %v903
        %v940 = vunpack.c.l.b16 %v904
        %v941 = vunpack.c.l.b16 %v905
        %v942 = vunpack.c.l.b16 %v906
        %v943 = vunpack.c.l.b16 %v907
        %v944 = vunpack.c.l.b16 %v908
        %v945 = vunpack.c.l.b16 %v909
        %v946 = vunpack.c.l.b16 %v910
        %v947 = vunpack.c.l.b16 %v911
        %v948 = vunpack.c.l.b16 %v912
        %v949 = vunpack.c.l.b16 %v913
        %v950 = vpack.c.b16 %v935, %v934
        %v951 = vpack.c.b16 %v937, %v936
        %v952 = vpack.c.b16 %v939, %v938
        %v953 = vpack.c.b16 %v941, %v940
        %v954 = vpack.c.b16 %v943, %v942
        %v955 = vpack.c.b16 %v945, %v944
        %v956 = vpack.c.b16 %v947, %v946
        %v957 = vpack.c.b16 %v949, %v948
        %966 = vmatpush.bf16.msra.mxu0 %v957
        %967 = vmatpush.bf16.msra.mxu0 %v956
        %968 = vmatpush.bf16.msra.mxu0 %v955
        %969 = vmatpush.bf16.msra.mxu0 %v954
        %970 = vmatpush.bf16.msra.mxu0 %v953
        %971 = vmatpush.bf16.msra.mxu0 %v952
        %972 = vmatpush.bf16.msra.mxu0 %v951
        %973 = vmatpush.bf16.msra.mxu0 %v950
        %974 = vmatmul.bf16.gmra.mxu0 %v897
        %v975 = vpop.f32.mrf.mxu0
        %v976 = vadd.f32 %v916, %v975
        %v977 = vpop.f32.mrf.mxu0
        %978 = vdwg.mxu0
        %v979 = vadd.f32 %v826, %v976
        %980 = vst.msk [vmem:[%s404] sm:$0xff] %vm413, %v979
        %s981 = sand.u32 %s291, 1
        %s982 = scalar_lea.sflag [#allocation7], %s981
        %s983 = sand.u32 %s291, 1
        %s984 = smul.addr %s983, 8
        %s985 = scalar_lea.vmem [#allocation6], %s984
        // Predicated region
        $region69: #{tpu_custom_call.1} parent=67 // pred_check
          %p986 = pneg %p301
        $region70: #{tpu_custom_call.1} parent=67 // pred_check_branch
          %988 = sbr.rel (%p986) target = $region72
        $region71: #{tpu_custom_call.1} parent=67 // pred_region
          %990 = vsyncadd %s982, 0
          %s991 = smul.addr %s26, 8
          %s992 = scalar_lea.hbm %s12, %s991
          %s994 = sshll.u32 %s985, 4
          %s995 = int_to_ptr.vmem [resolvable:$true] %s994
          %s996 = sshll.u32 %s992, 4
          %s997 = int_to_ptr.hbm [resolvable:$true] %s996
          %999 = dma.vmem_to_hbm [thread:$0]  %s995, 128, %s997, %s982
        $region72: #{tpu_custom_call.1} parent=67 // pred_fallthru
          _
      $region68: #{tpu_custom_call.1} parent=5 // pred_fallthru
        _
      %p1000 = scmp.le.s32.totalorder 2, %s21
      // Predicated region
      $region73: #{tpu_custom_call.1} parent=5 // pred_check
        %p1001 = pneg %p1000
      $region74: #{tpu_custom_call.1} parent=5 // pred_check_branch
        %1003 = sbr.rel (%p1001) target = $region76
      $region75: #{tpu_custom_call.1} parent=5 // pred_region
        %s1004 = ssub.s32 %s21, 2
        // Predicated region
        $region77: #{tpu_custom_call.1} parent=75 // pred_check
          %p1005 = pneg %p307
        $region78: #{tpu_custom_call.1} parent=75 // pred_check_branch
          %1007 = sbr.rel (%p1005) target = $region80
        $region79: #{tpu_custom_call.1} parent=75 // pred_region
          %s1008 = sand.u32 %s292, 1
          %s1009 = scalar_lea.sflag [#allocation7], %s1008
          %s1010 = sand.u32 %s292, 1
          %s1011 = smul.addr %s1010, 8
          %s1012 = scalar_lea.vmem [#allocation6], %s1011
          %1014 = dma.done %s1009, 128
        $region80: #{tpu_custom_call.1} parent=75 // pred_fallthru
          _
      $region76: #{tpu_custom_call.1} parent=5 // pred_fallthru
        _
    $region6: #{tpu_custom_call.1} parent=1 // loop_footer
      %s25 = sadd.s32 1, %s21
    $region7: #{tpu_custom_call.1} parent=1 // loop_footer_branch
      %20 = sbr.rel target = $region3
    $region8: #{tpu_custom_call.1} parent=1 // loop_exit
      _
    %1015 = vsyncpa [#allocation7], 1
    %s1016 = scalar_lea.sflag [#allocation7], 1
    %1017 = vsyncpa %s1016, 1

</llo_original>
